<compile_context>
chip_gen: v7x
topology: tpu7x:2x2x1
jax: 0.10.0
libtpu: 0.0.40
codegen_flags: <defaults>
</compile_context>

<pallas_src>
import math

import jax
import jax.numpy as jnp
from jax.experimental import pallas as pl
from jax.experimental.pallas import tpu as pltpu


def _round_up(v, m):
    return ((v + m - 1) // m) * m


# ------------------------------ fused kernel ---------------------------------
def _make_fused_kernel(num_layers, seq_len, hidden_size):
    T = seq_len
    H = hidden_size

    def kernel(x_ref, *refs):
        # refs = [wih_0, whh_0, b_0, ..., wih_{L-1}, whh_{L-1}, b_{L-1},
        #         wfc_pad, bfc_pad, out_ref]
        out_ref = refs[-1]
        w_refs = refs[:-1]
        Bt = x_ref.shape[1]
        in_dim0 = x_ref.shape[2]

        # t-major (T*Bt, in_dim) slab so each layer's T input projections fuse
        # into a single MXU matmul; Bt % 8 == 0 keeps per-t slices sublane-
        # aligned (no relayout on the recurrence path).
        x_all = x_ref[...].reshape(T * Bt, in_dim0)

        h_last = None
        for layer in range(num_layers):
            wih = w_refs[3 * layer][...]                      # (in_dim, 4H)
            whh = w_refs[3 * layer + 1][...]                  # (H, 4H)
            b = w_refs[3 * layer + 2][...]                    # (1, 4H)

            # Fused input projection for ALL timesteps + ONE bias broadcast.
            pre_all = jnp.dot(x_all, wih,
                              preferred_element_type=jnp.float32) + b

            h = jnp.zeros((Bt, H), jnp.float32)
            c = jnp.zeros((Bt, H), jnp.float32)
            outs = []
            for t in range(T):
                pre_t = pre_all[t * Bt:(t + 1) * Bt, :]        # (Bt, 4H)
                gates = pre_t + jnp.dot(
                    h, whh, preferred_element_type=jnp.float32)
                if 4 * H <= 128:
                    # Gates fit one lane block: one sigmoid pass + one tanh
                    # pass over the whole vreg is the minimal EUP scheme.
                    sg = jax.nn.sigmoid(gates)
                    tg = jnp.tanh(gates)
                    i_g = sg[:, 0 * H:1 * H]
                    f_g = sg[:, 1 * H:2 * H]
                    g_g = tg[:, 2 * H:3 * H]
                    o_g = sg[:, 3 * H:4 * H]
                else:
                    # Wide gates (4H > 128): activate each gate block exactly
                    # once so EUP work on the serial recurrence stays at 4
                    # H-wide passes instead of 2x full-width passes.
                    i_g = jax.nn.sigmoid(gates[:, 0 * H:1 * H])
                    f_g = jax.nn.sigmoid(gates[:, 1 * H:2 * H])
                    g_g = jnp.tanh(gates[:, 2 * H:3 * H])
                    o_g = jax.nn.sigmoid(gates[:, 3 * H:4 * H])
                c = f_g * c + i_g * g_g
                h = o_g * jnp.tanh(c)
                outs.append(h)
            h_last = h
            if layer < num_layers - 1:
                # Next layer's fused-projection input slab (t-major).
                x_all = jnp.concatenate(outs, axis=0)          # (T*Bt, H)
            # TODO(synk): nn.LSTM inter-layer dropout is train-mode only; this
            # is an inference forward, so it is intentionally omitted.

        wfc = w_refs[3 * num_layers][...]                      # (H, C_pad)
        bfc = w_refs[3 * num_layers + 1][...]                  # (1, C_pad)
        logits = jnp.dot(h_last, wfc,
                         preferred_element_type=jnp.float32) + bfc
        m = jnp.max(logits, axis=-1, keepdims=True)
        z = logits - m
        lse = jnp.log(jnp.sum(jnp.exp(z), axis=-1, keepdims=True))
        out_ref[...] = (z - lse).astype(out_ref.dtype)         # (Bt, C_pad)

    return kernel


# --------------------------------- wrapper ------------------------------------
@jax.jit
def mnist_lstm_forward(x, params):
    """x: (B, T, I) -> log-probs (B, num_classes)."""
    B, T, I = x.shape
    H = params["lstm"][0]["whh_t"].shape[0]
    C = params["fc_b"].shape[0]
    c_pad = _round_up(C, 128)

    # Batch padding: >=8 sublanes; tiles of <=128 rows over a "parallel" grid
    # axis (fills the MXU M dim, shards batch tiles across v7x's two TCs).
    max_bt = 128
    if B <= max_bt:
        b_pad = max(8, _round_up(B, 8))
        bt = b_pad
    else:
        bt = max_bt
        b_pad = _round_up(B, bt)
    n_btiles = b_pad // bt

    x_pad = jnp.zeros((b_pad, T, I), jnp.float32).at[:B].set(
        x.astype(jnp.float32))
    x_tbi = jnp.transpose(x_pad, (1, 0, 2))                    # (T, b_pad, I)

    # Lane-dense FC operands: zero-padded weight columns, -1e30 bias padding so
    # padded logits never affect max / logsumexp and the store is full-lane.
    wfc_pad = jnp.zeros((H, c_pad), jnp.float32).at[:, :C].set(params["fc_w_t"])
    bfc_pad = jnp.full((1, c_pad), -1e30, jnp.float32).at[0, :C].set(
        params["fc_b"])

    w_args = []
    for layer in params["lstm"]:
        w_args += [layer["wih_t"], layer["whh_t"], layer["b"]]
    w_args += [wfc_pad, bfc_pad]

    kernel = _make_fused_kernel(len(params["lstm"]), T, H)
    vmem_full = pl.BlockSpec(memory_space=pltpu.MemorySpace.VMEM)
    out = pl.pallas_call(
        kernel,
        out_shape=jax.ShapeDtypeStruct((b_pad, c_pad), jnp.float32),
        grid=(n_btiles,),
        in_specs=[pl.BlockSpec((T, bt, I), lambda b: (0, b, 0))]
        + [vmem_full] * len(w_args),
        out_specs=pl.BlockSpec((bt, c_pad), lambda b: (b, 0)),
        compiler_params=pltpu.CompilerParams(
            dimension_semantics=("parallel",)),
    )(x_tbi, *w_args)
    return out[:B, :C]


# --------------------------------- params -------------------------------------
def init_params(key, input_size, hidden_size, num_layers, num_classes):
    """Deterministic PyTorch-style init: U(-1/sqrt(H), 1/sqrt(H))."""
    k = 1.0 / math.sqrt(hidden_size)
    params = {"lstm": []}
    for layer in range(num_layers):
        in_dim = input_size if layer == 0 else hidden_size
        key, k1, k2, k3, k4 = jax.random.split(key, 5)
        w_ih = jax.random.uniform(k1, (4 * hidden_size, in_dim), jnp.float32, -k, k)
        w_hh = jax.random.uniform(k2, (4 * hidden_size, hidden_size), jnp.float32, -k, k)
        b_ih = jax.random.uniform(k3, (4 * hidden_size,), jnp.float32, -k, k)
        b_hh = jax.random.uniform(k4, (4 * hidden_size,), jnp.float32, -k, k)
        params["lstm"].append({
            "wih_t": w_ih.T,                               # (in_dim, 4H)
            "whh_t": w_hh.T,                               # (H, 4H)
            "b": (b_ih + b_hh).reshape(1, 4 * hidden_size),
        })
    key, k5, k6 = jax.random.split(key, 3)
    kf = 1.0 / math.sqrt(hidden_size)
    w_fc = jax.random.uniform(k5, (num_classes, hidden_size), jnp.float32, -kf, kf)
    b_fc = jax.random.uniform(k6, (num_classes,), jnp.float32, -kf, kf)
    params["fc_w_t"] = w_fc.T                              # (H, C)
    params["fc_b"] = b_fc
    return params


# ----------------------------- pure-JAX reference ------------------------------
def _reference_forward(x, params):
    h_seq = jnp.transpose(x, (1, 0, 2))
    for layer in params["lstm"]:
        H = layer["whh_t"].shape[0]

        def step(carry, x_t, layer=layer, H=H):
            h, c = carry
            gates = x_t @ layer["wih_t"] + h @ layer["whh_t"] + layer["b"]
            i_g = jax.nn.sigmoid(gates[:, 0 * H:1 * H])
            f_g = jax.nn.sigmoid(gates[:, 1 * H:2 * H])
            g_g = jnp.tanh(gates[:, 2 * H:3 * H])
            o_g = jax.nn.sigmoid(gates[:, 3 * H:4 * H])
            c_new = f_g * c + i_g * g_g
            h_new = o_g * jnp.tanh(c_new)
            return (h_new, c_new), h_new

        B = x.shape[0]
        init = (jnp.zeros((B, H), jnp.float32), jnp.zeros((B, H), jnp.float32))
        _, h_seq = jax.lax.scan(step, init, h_seq)
    logits = h_seq[-1] @ params["fc_w_t"] + params["fc_b"]
    return jax.nn.log_softmax(logits, axis=1)


if __name__ == "__main__":
    batch, seq_len, input_size = 2, 8, 16
    hidden_size, num_layers, num_classes = 32, 2, 10

    key = jax.random.PRNGKey(0)
    key, xk = jax.random.split(key)
    x = jax.random.normal(xk, (batch, seq_len, input_size), jnp.float32)
    params = init_params(key, input_size, hidden_size, num_layers, num_classes)

    out = mnist_lstm_forward(x, params)
    out = jax.block_until_ready(out)

    ref = _reference_forward(x, params)
    assert out.shape == (batch, num_classes)
    assert jnp.allclose(out, ref, atol=1e-4, rtol=1e-4), "mismatch vs reference"

    print("KERNEL_OK")
</pallas_src>

<mosaic_0001>
module attributes {stable_mosaic.version = 11 : i64} {
  func.func @kernel(%arg0: i32, %arg1: memref<8x8x16xf32, #tpu.memory_space<vmem>>, %arg2: memref<16x128xf32, #tpu.memory_space<vmem>>, %arg3: memref<32x128xf32, #tpu.memory_space<vmem>>, %arg4: memref<1x128xf32, #tpu.memory_space<vmem>>, %arg5: memref<32x128xf32, #tpu.memory_space<vmem>>, %arg6: memref<32x128xf32, #tpu.memory_space<vmem>>, %arg7: memref<1x128xf32, #tpu.memory_space<vmem>>, %arg8: memref<32x128xf32, #tpu.memory_space<vmem>>, %arg9: memref<1x128xf32, #tpu.memory_space<vmem>>, %arg10: memref<8x128xf32, #tpu.memory_space<vmem>>) attributes {dimension_semantics = [#tpu.dimension_semantics<parallel>], iteration_bounds = array<i64: 1>, scalar_prefetch = 0 : i64, scratch_operands = 0 : i64, tpu.core_type = #tpu.core_type<tc>, window_params = [{transform_indices = @transform_0, window_bounds = array<i64: 8, 8, 16>}, {pipeline_mode = #tpu.pipeline_mode<synchronous>, transform_indices = @transform_1, window_bounds = array<i64: 16, 128>}, {pipeline_mode = #tpu.pipeline_mode<synchronous>, transform_indices = @transform_2, window_bounds = array<i64: 32, 128>}, {pipeline_mode = #tpu.pipeline_mode<synchronous>, transform_indices = @transform_3, window_bounds = array<i64: 1, 128>}, {pipeline_mode = #tpu.pipeline_mode<synchronous>, transform_indices = @transform_4, window_bounds = array<i64: 32, 128>}, {pipeline_mode = #tpu.pipeline_mode<synchronous>, transform_indices = @transform_5, window_bounds = array<i64: 32, 128>}, {pipeline_mode = #tpu.pipeline_mode<synchronous>, transform_indices = @transform_6, window_bounds = array<i64: 1, 128>}, {pipeline_mode = #tpu.pipeline_mode<synchronous>, transform_indices = @transform_7, window_bounds = array<i64: 32, 128>}, {pipeline_mode = #tpu.pipeline_mode<synchronous>, transform_indices = @transform_8, window_bounds = array<i64: 1, 128>}, {transform_indices = @transform_9, window_bounds = array<i64: 8, 128>}]} {
    %c0 = arith.constant 0 : index
    %c0_0 = arith.constant 0 : index
    %c0_1 = arith.constant 0 : index
    %0 = vector.load %arg1[%c0, %c0_0, %c0_1] : memref<8x8x16xf32, #tpu.memory_space<vmem>>, vector<8x8x16xf32>
    %1 = vector.shape_cast %0 : vector<8x8x16xf32> to vector<64x16xf32>
    %c0_2 = arith.constant 0 : index
    %c0_3 = arith.constant 0 : index
    %2 = vector.load %arg2[%c0_2, %c0_3] : memref<16x128xf32, #tpu.memory_space<vmem>>, vector<16x128xf32>
    %c0_4 = arith.constant 0 : index
    %c0_5 = arith.constant 0 : index
    %3 = vector.load %arg3[%c0_4, %c0_5] : memref<32x128xf32, #tpu.memory_space<vmem>>, vector<32x128xf32>
    %c0_6 = arith.constant 0 : index
    %c0_7 = arith.constant 0 : index
    %4 = vector.load %arg4[%c0_6, %c0_7] : memref<1x128xf32, #tpu.memory_space<vmem>>, vector<1x128xf32>
    %cst = arith.constant dense<0.000000e+00> : vector<64x128xf32>
    %5 = tpu.matmul %1, %2, %cst {dimension_numbers = #tpu.dot_dimension_numbers<[1], [0], [0], [1], [0, 0, 1, 1], [], []>} : vector<64x16xf32>, vector<16x128xf32>, vector<64x128xf32> -> vector<64x128xf32>
    %6 = vector.broadcast %4 : vector<1x128xf32> to vector<64x128xf32>
    %7 = arith.addf %5, %6 : vector<64x128xf32>
    %cst_8 = arith.constant 0.000000e+00 : f32
    %8 = vector.broadcast %cst_8 : f32 to vector<8x32xf32>
    %cst_9 = arith.constant 0.000000e+00 : f32
    %9 = vector.broadcast %cst_9 : f32 to vector<8x32xf32>
    %10 = vector.extract_strided_slice %7 {offsets = [0, 0], sizes = [8, 128], strides = [1, 1]} : vector<64x128xf32> to vector<8x128xf32>
    %cst_10 = arith.constant dense<0.000000e+00> : vector<8x128xf32>
    %11 = tpu.matmul %8, %3, %cst_10 {dimension_numbers = #tpu.dot_dimension_numbers<[1], [0], [0], [1], [0, 0, 1, 1], [], []>} : vector<8x32xf32>, vector<32x128xf32>, vector<8x128xf32> -> vector<8x128xf32>
    %12 = arith.addf %10, %11 : vector<8x128xf32>
    %13 = arith.negf %12 : vector<8x128xf32>
    %14 = math.exp %13 : vector<8x128xf32>
    %cst_11 = arith.constant 1.000000e+00 : f32
    %15 = vector.broadcast %cst_11 : f32 to vector<8x128xf32>
    %16 = arith.addf %15, %14 : vector<8x128xf32>
    %17 = arith.divf %15, %16 : vector<8x128xf32>
    %18 = math.tanh %12 : vector<8x128xf32>
    %19 = vector.extract_strided_slice %17 {offsets = [0, 0], sizes = [8, 32], strides = [1, 1]} : vector<8x128xf32> to vector<8x32xf32>
    %20 = vector.extract_strided_slice %17 {offsets = [0, 32], sizes = [8, 32], strides = [1, 1]} : vector<8x128xf32> to vector<8x32xf32>
    %21 = vector.extract_strided_slice %18 {offsets = [0, 64], sizes = [8, 32], strides = [1, 1]} : vector<8x128xf32> to vector<8x32xf32>
    %22 = vector.extract_strided_slice %17 {offsets = [0, 96], sizes = [8, 32], strides = [1, 1]} : vector<8x128xf32> to vector<8x32xf32>
    %23 = arith.mulf %20, %9 : vector<8x32xf32>
    %24 = arith.mulf %19, %21 : vector<8x32xf32>
    %25 = arith.addf %23, %24 : vector<8x32xf32>
    %26 = math.tanh %25 : vector<8x32xf32>
    %27 = arith.mulf %22, %26 : vector<8x32xf32>
    %28 = vector.extract_strided_slice %7 {offsets = [8, 0], sizes = [8, 128], strides = [1, 1]} : vector<64x128xf32> to vector<8x128xf32>
    %cst_12 = arith.constant dense<0.000000e+00> : vector<8x128xf32>
    %29 = tpu.matmul %27, %3, %cst_12 {dimension_numbers = #tpu.dot_dimension_numbers<[1], [0], [0], [1], [0, 0, 1, 1], [], []>} : vector<8x32xf32>, vector<32x128xf32>, vector<8x128xf32> -> vector<8x128xf32>
    %30 = arith.addf %28, %29 : vector<8x128xf32>
    %31 = arith.negf %30 : vector<8x128xf32>
    %32 = math.exp %31 : vector<8x128xf32>
    %cst_13 = arith.constant 1.000000e+00 : f32
    %33 = vector.broadcast %cst_13 : f32 to vector<8x128xf32>
    %34 = arith.addf %33, %32 : vector<8x128xf32>
    %35 = arith.divf %33, %34 : vector<8x128xf32>
    %36 = math.tanh %30 : vector<8x128xf32>
    %37 = vector.extract_strided_slice %35 {offsets = [0, 0], sizes = [8, 32], strides = [1, 1]} : vector<8x128xf32> to vector<8x32xf32>
    %38 = vector.extract_strided_slice %35 {offsets = [0, 32], sizes = [8, 32], strides = [1, 1]} : vector<8x128xf32> to vector<8x32xf32>
    %39 = vector.extract_strided_slice %36 {offsets = [0, 64], sizes = [8, 32], strides = [1, 1]} : vector<8x128xf32> to vector<8x32xf32>
    %40 = vector.extract_strided_slice %35 {offsets = [0, 96], sizes = [8, 32], strides = [1, 1]} : vector<8x128xf32> to vector<8x32xf32>
    %41 = arith.mulf %38, %25 : vector<8x32xf32>
    %42 = arith.mulf %37, %39 : vector<8x32xf32>
    %43 = arith.addf %41, %42 : vector<8x32xf32>
    %44 = math.tanh %43 : vector<8x32xf32>
    %45 = arith.mulf %40, %44 : vector<8x32xf32>
    %46 = vector.extract_strided_slice %7 {offsets = [16, 0], sizes = [8, 128], strides = [1, 1]} : vector<64x128xf32> to vector<8x128xf32>
    %cst_14 = arith.constant dense<0.000000e+00> : vector<8x128xf32>
    %47 = tpu.matmul %45, %3, %cst_14 {dimension_numbers = #tpu.dot_dimension_numbers<[1], [0], [0], [1], [0, 0, 1, 1], [], []>} : vector<8x32xf32>, vector<32x128xf32>, vector<8x128xf32> -> vector<8x128xf32>
    %48 = arith.addf %46, %47 : vector<8x128xf32>
    %49 = arith.negf %48 : vector<8x128xf32>
    %50 = math.exp %49 : vector<8x128xf32>
    %cst_15 = arith.constant 1.000000e+00 : f32
    %51 = vector.broadcast %cst_15 : f32 to vector<8x128xf32>
    %52 = arith.addf %51, %50 : vector<8x128xf32>
    %53 = arith.divf %51, %52 : vector<8x128xf32>
    %54 = math.tanh %48 : vector<8x128xf32>
    %55 = vector.extract_strided_slice %53 {offsets = [0, 0], sizes = [8, 32], strides = [1, 1]} : vector<8x128xf32> to vector<8x32xf32>
    %56 = vector.extract_strided_slice %53 {offsets = [0, 32], sizes = [8, 32], strides = [1, 1]} : vector<8x128xf32> to vector<8x32xf32>
    %57 = vector.extract_strided_slice %54 {offsets = [0, 64], sizes = [8, 32], strides = [1, 1]} : vector<8x128xf32> to vector<8x32xf32>
    %58 = vector.extract_strided_slice %53 {offsets = [0, 96], sizes = [8, 32], strides = [1, 1]} : vector<8x128xf32> to vector<8x32xf32>
    %59 = arith.mulf %56, %43 : vector<8x32xf32>
    %60 = arith.mulf %55, %57 : vector<8x32xf32>
    %61 = arith.addf %59, %60 : vector<8x32xf32>
    %62 = math.tanh %61 : vector<8x32xf32>
    %63 = arith.mulf %58, %62 : vector<8x32xf32>
    %64 = vector.extract_strided_slice %7 {offsets = [24, 0], sizes = [8, 128], strides = [1, 1]} : vector<64x128xf32> to vector<8x128xf32>
    %cst_16 = arith.constant dense<0.000000e+00> : vector<8x128xf32>
    %65 = tpu.matmul %63, %3, %cst_16 {dimension_numbers = #tpu.dot_dimension_numbers<[1], [0], [0], [1], [0, 0, 1, 1], [], []>} : vector<8x32xf32>, vector<32x128xf32>, vector<8x128xf32> -> vector<8x128xf32>
    %66 = arith.addf %64, %65 : vector<8x128xf32>
    %67 = arith.negf %66 : vector<8x128xf32>
    %68 = math.exp %67 : vector<8x128xf32>
    %cst_17 = arith.constant 1.000000e+00 : f32
    %69 = vector.broadcast %cst_17 : f32 to vector<8x128xf32>
    %70 = arith.addf %69, %68 : vector<8x128xf32>
    %71 = arith.divf %69, %70 : vector<8x128xf32>
    %72 = math.tanh %66 : vector<8x128xf32>
    %73 = vector.extract_strided_slice %71 {offsets = [0, 0], sizes = [8, 32], strides = [1, 1]} : vector<8x128xf32> to vector<8x32xf32>
    %74 = vector.extract_strided_slice %71 {offsets = [0, 32], sizes = [8, 32], strides = [1, 1]} : vector<8x128xf32> to vector<8x32xf32>
    %75 = vector.extract_strided_slice %72 {offsets = [0, 64], sizes = [8, 32], strides = [1, 1]} : vector<8x128xf32> to vector<8x32xf32>
    %76 = vector.extract_strided_slice %71 {offsets = [0, 96], sizes = [8, 32], strides = [1, 1]} : vector<8x128xf32> to vector<8x32xf32>
    %77 = arith.mulf %74, %61 : vector<8x32xf32>
    %78 = arith.mulf %73, %75 : vector<8x32xf32>
    %79 = arith.addf %77, %78 : vector<8x32xf32>
    %80 = math.tanh %79 : vector<8x32xf32>
    %81 = arith.mulf %76, %80 : vector<8x32xf32>
    %82 = vector.extract_strided_slice %7 {offsets = [32, 0], sizes = [8, 128], strides = [1, 1]} : vector<64x128xf32> to vector<8x128xf32>
    %cst_18 = arith.constant dense<0.000000e+00> : vector<8x128xf32>
    %83 = tpu.matmul %81, %3, %cst_18 {dimension_numbers = #tpu.dot_dimension_numbers<[1], [0], [0], [1], [0, 0, 1, 1], [], []>} : vector<8x32xf32>, vector<32x128xf32>, vector<8x128xf32> -> vector<8x128xf32>
    %84 = arith.addf %82, %83 : vector<8x128xf32>
    %85 = arith.negf %84 : vector<8x128xf32>
    %86 = math.exp %85 : vector<8x128xf32>
    %cst_19 = arith.constant 1.000000e+00 : f32
    %87 = vector.broadcast %cst_19 : f32 to vector<8x128xf32>
    %88 = arith.addf %87, %86 : vector<8x128xf32>
    %89 = arith.divf %87, %88 : vector<8x128xf32>
    %90 = math.tanh %84 : vector<8x128xf32>
    %91 = vector.extract_strided_slice %89 {offsets = [0, 0], sizes = [8, 32], strides = [1, 1]} : vector<8x128xf32> to vector<8x32xf32>
    %92 = vector.extract_strided_slice %89 {offsets = [0, 32], sizes = [8, 32], strides = [1, 1]} : vector<8x128xf32> to vector<8x32xf32>
    %93 = vector.extract_strided_slice %90 {offsets = [0, 64], sizes = [8, 32], strides = [1, 1]} : vector<8x128xf32> to vector<8x32xf32>
    %94 = vector.extract_strided_slice %89 {offsets = [0, 96], sizes = [8, 32], strides = [1, 1]} : vector<8x128xf32> to vector<8x32xf32>
    %95 = arith.mulf %92, %79 : vector<8x32xf32>
    %96 = arith.mulf %91, %93 : vector<8x32xf32>
    %97 = arith.addf %95, %96 : vector<8x32xf32>
    %98 = math.tanh %97 : vector<8x32xf32>
    %99 = arith.mulf %94, %98 : vector<8x32xf32>
    %100 = vector.extract_strided_slice %7 {offsets = [40, 0], sizes = [8, 128], strides = [1, 1]} : vector<64x128xf32> to vector<8x128xf32>
    %cst_20 = arith.constant dense<0.000000e+00> : vector<8x128xf32>
    %101 = tpu.matmul %99, %3, %cst_20 {dimension_numbers = #tpu.dot_dimension_numbers<[1], [0], [0], [1], [0, 0, 1, 1], [], []>} : vector<8x32xf32>, vector<32x128xf32>, vector<8x128xf32> -> vector<8x128xf32>
    %102 = arith.addf %100, %101 : vector<8x128xf32>
    %103 = arith.negf %102 : vector<8x128xf32>
    %104 = math.exp %103 : vector<8x128xf32>
    %cst_21 = arith.constant 1.000000e+00 : f32
    %105 = vector.broadcast %cst_21 : f32 to vector<8x128xf32>
    %106 = arith.addf %105, %104 : vector<8x128xf32>
    %107 = arith.divf %105, %106 : vector<8x128xf32>
    %108 = math.tanh %102 : vector<8x128xf32>
    %109 = vector.extract_strided_slice %107 {offsets = [0, 0], sizes = [8, 32], strides = [1, 1]} : vector<8x128xf32> to vector<8x32xf32>
    %110 = vector.extract_strided_slice %107 {offsets = [0, 32], sizes = [8, 32], strides = [1, 1]} : vector<8x128xf32> to vector<8x32xf32>
    %111 = vector.extract_strided_slice %108 {offsets = [0, 64], sizes = [8, 32], strides = [1, 1]} : vector<8x128xf32> to vector<8x32xf32>
    %112 = vector.extract_strided_slice %107 {offsets = [0, 96], sizes = [8, 32], strides = [1, 1]} : vector<8x128xf32> to vector<8x32xf32>
    %113 = arith.mulf %110, %97 : vector<8x32xf32>
    %114 = arith.mulf %109, %111 : vector<8x32xf32>
    %115 = arith.addf %113, %114 : vector<8x32xf32>
    %116 = math.tanh %115 : vector<8x32xf32>
    %117 = arith.mulf %112, %116 : vector<8x32xf32>
    %118 = vector.extract_strided_slice %7 {offsets = [48, 0], sizes = [8, 128], strides = [1, 1]} : vector<64x128xf32> to vector<8x128xf32>
    %cst_22 = arith.constant dense<0.000000e+00> : vector<8x128xf32>
    %119 = tpu.matmul %117, %3, %cst_22 {dimension_numbers = #tpu.dot_dimension_numbers<[1], [0], [0], [1], [0, 0, 1, 1], [], []>} : vector<8x32xf32>, vector<32x128xf32>, vector<8x128xf32> -> vector<8x128xf32>
    %120 = arith.addf %118, %119 : vector<8x128xf32>
    %121 = arith.negf %120 : vector<8x128xf32>
    %122 = math.exp %121 : vector<8x128xf32>
    %cst_23 = arith.constant 1.000000e+00 : f32
    %123 = vector.broadcast %cst_23 : f32 to vector<8x128xf32>
    %124 = arith.addf %123, %122 : vector<8x128xf32>
    %125 = arith.divf %123, %124 : vector<8x128xf32>
    %126 = math.tanh %120 : vector<8x128xf32>
    %127 = vector.extract_strided_slice %125 {offsets = [0, 0], sizes = [8, 32], strides = [1, 1]} : vector<8x128xf32> to vector<8x32xf32>
    %128 = vector.extract_strided_slice %125 {offsets = [0, 32], sizes = [8, 32], strides = [1, 1]} : vector<8x128xf32> to vector<8x32xf32>
    %129 = vector.extract_strided_slice %126 {offsets = [0, 64], sizes = [8, 32], strides = [1, 1]} : vector<8x128xf32> to vector<8x32xf32>
    %130 = vector.extract_strided_slice %125 {offsets = [0, 96], sizes = [8, 32], strides = [1, 1]} : vector<8x128xf32> to vector<8x32xf32>
    %131 = arith.mulf %128, %115 : vector<8x32xf32>
    %132 = arith.mulf %127, %129 : vector<8x32xf32>
    %133 = arith.addf %131, %132 : vector<8x32xf32>
    %134 = math.tanh %133 : vector<8x32xf32>
    %135 = arith.mulf %130, %134 : vector<8x32xf32>
    %136 = vector.extract_strided_slice %7 {offsets = [56, 0], sizes = [8, 128], strides = [1, 1]} : vector<64x128xf32> to vector<8x128xf32>
    %cst_24 = arith.constant dense<0.000000e+00> : vector<8x128xf32>
    %137 = tpu.matmul %135, %3, %cst_24 {dimension_numbers = #tpu.dot_dimension_numbers<[1], [0], [0], [1], [0, 0, 1, 1], [], []>} : vector<8x32xf32>, vector<32x128xf32>, vector<8x128xf32> -> vector<8x128xf32>
    %138 = arith.addf %136, %137 : vector<8x128xf32>
    %139 = arith.negf %138 : vector<8x128xf32>
    %140 = math.exp %139 : vector<8x128xf32>
    %cst_25 = arith.constant 1.000000e+00 : f32
    %141 = vector.broadcast %cst_25 : f32 to vector<8x128xf32>
    %142 = arith.addf %141, %140 : vector<8x128xf32>
    %143 = arith.divf %141, %142 : vector<8x128xf32>
    %144 = math.tanh %138 : vector<8x128xf32>
    %145 = vector.extract_strided_slice %143 {offsets = [0, 0], sizes = [8, 32], strides = [1, 1]} : vector<8x128xf32> to vector<8x32xf32>
    %146 = vector.extract_strided_slice %143 {offsets = [0, 32], sizes = [8, 32], strides = [1, 1]} : vector<8x128xf32> to vector<8x32xf32>
    %147 = vector.extract_strided_slice %144 {offsets = [0, 64], sizes = [8, 32], strides = [1, 1]} : vector<8x128xf32> to vector<8x32xf32>
    %148 = vector.extract_strided_slice %143 {offsets = [0, 96], sizes = [8, 32], strides = [1, 1]} : vector<8x128xf32> to vector<8x32xf32>
    %149 = arith.mulf %146, %133 : vector<8x32xf32>
    %150 = arith.mulf %145, %147 : vector<8x32xf32>
    %151 = arith.addf %149, %150 : vector<8x32xf32>
    %152 = math.tanh %151 : vector<8x32xf32>
    %153 = arith.mulf %148, %152 : vector<8x32xf32>
    %154 = tpu.concatenate %27, %45, %63, %81, %99, %117, %135, %153 in 0 : vector<8x32xf32>, vector<8x32xf32>, vector<8x32xf32>, vector<8x32xf32>, vector<8x32xf32>, vector<8x32xf32>, vector<8x32xf32>, vector<8x32xf32> -> vector<64x32xf32>
    %c0_26 = arith.constant 0 : index
    %c0_27 = arith.constant 0 : index
    %155 = vector.load %arg5[%c0_26, %c0_27] : memref<32x128xf32, #tpu.memory_space<vmem>>, vector<32x128xf32>
    %c0_28 = arith.constant 0 : index
    %c0_29 = arith.constant 0 : index
    %156 = vector.load %arg6[%c0_28, %c0_29] : memref<32x128xf32, #tpu.memory_space<vmem>>, vector<32x128xf32>
    %c0_30 = arith.constant 0 : index
    %c0_31 = arith.constant 0 : index
    %157 = vector.load %arg7[%c0_30, %c0_31] : memref<1x128xf32, #tpu.memory_space<vmem>>, vector<1x128xf32>
    %cst_32 = arith.constant dense<0.000000e+00> : vector<64x128xf32>
    %158 = tpu.matmul %154, %155, %cst_32 {dimension_numbers = #tpu.dot_dimension_numbers<[1], [0], [0], [1], [0, 0, 1, 1], [], []>} : vector<64x32xf32>, vector<32x128xf32>, vector<64x128xf32> -> vector<64x128xf32>
    %159 = vector.broadcast %157 : vector<1x128xf32> to vector<64x128xf32>
    %160 = arith.addf %158, %159 : vector<64x128xf32>
    %cst_33 = arith.constant 0.000000e+00 : f32
    %161 = vector.broadcast %cst_33 : f32 to vector<8x32xf32>
    %cst_34 = arith.constant 0.000000e+00 : f32
    %162 = vector.broadcast %cst_34 : f32 to vector<8x32xf32>
    %163 = vector.extract_strided_slice %160 {offsets = [0, 0], sizes = [8, 128], strides = [1, 1]} : vector<64x128xf32> to vector<8x128xf32>
    %cst_35 = arith.constant dense<0.000000e+00> : vector<8x128xf32>
    %164 = tpu.matmul %161, %156, %cst_35 {dimension_numbers = #tpu.dot_dimension_numbers<[1], [0], [0], [1], [0, 0, 1, 1], [], []>} : vector<8x32xf32>, vector<32x128xf32>, vector<8x128xf32> -> vector<8x128xf32>
    %165 = arith.addf %163, %164 : vector<8x128xf32>
    %166 = arith.negf %165 : vector<8x128xf32>
    %167 = math.exp %166 : vector<8x128xf32>
    %cst_36 = arith.constant 1.000000e+00 : f32
    %168 = vector.broadcast %cst_36 : f32 to vector<8x128xf32>
    %169 = arith.addf %168, %167 : vector<8x128xf32>
    %170 = arith.divf %168, %169 : vector<8x128xf32>
    %171 = math.tanh %165 : vector<8x128xf32>
    %172 = vector.extract_strided_slice %170 {offsets = [0, 0], sizes = [8, 32], strides = [1, 1]} : vector<8x128xf32> to vector<8x32xf32>
    %173 = vector.extract_strided_slice %170 {offsets = [0, 32], sizes = [8, 32], strides = [1, 1]} : vector<8x128xf32> to vector<8x32xf32>
    %174 = vector.extract_strided_slice %171 {offsets = [0, 64], sizes = [8, 32], strides = [1, 1]} : vector<8x128xf32> to vector<8x32xf32>
    %175 = vector.extract_strided_slice %170 {offsets = [0, 96], sizes = [8, 32], strides = [1, 1]} : vector<8x128xf32> to vector<8x32xf32>
    %176 = arith.mulf %173, %162 : vector<8x32xf32>
    %177 = arith.mulf %172, %174 : vector<8x32xf32>
    %178 = arith.addf %176, %177 : vector<8x32xf32>
    %179 = math.tanh %178 : vector<8x32xf32>
    %180 = arith.mulf %175, %179 : vector<8x32xf32>
    %181 = vector.extract_strided_slice %160 {offsets = [8, 0], sizes = [8, 128], strides = [1, 1]} : vector<64x128xf32> to vector<8x128xf32>
    %cst_37 = arith.constant dense<0.000000e+00> : vector<8x128xf32>
    %182 = tpu.matmul %180, %156, %cst_37 {dimension_numbers = #tpu.dot_dimension_numbers<[1], [0], [0], [1], [0, 0, 1, 1], [], []>} : vector<8x32xf32>, vector<32x128xf32>, vector<8x128xf32> -> vector<8x128xf32>
    %183 = arith.addf %181, %182 : vector<8x128xf32>
    %184 = arith.negf %183 : vector<8x128xf32>
    %185 = math.exp %184 : vector<8x128xf32>
    %cst_38 = arith.constant 1.000000e+00 : f32
    %186 = vector.broadcast %cst_38 : f32 to vector<8x128xf32>
    %187 = arith.addf %186, %185 : vector<8x128xf32>
    %188 = arith.divf %186, %187 : vector<8x128xf32>
    %189 = math.tanh %183 : vector<8x128xf32>
    %190 = vector.extract_strided_slice %188 {offsets = [0, 0], sizes = [8, 32], strides = [1, 1]} : vector<8x128xf32> to vector<8x32xf32>
    %191 = vector.extract_strided_slice %188 {offsets = [0, 32], sizes = [8, 32], strides = [1, 1]} : vector<8x128xf32> to vector<8x32xf32>
    %192 = vector.extract_strided_slice %189 {offsets = [0, 64], sizes = [8, 32], strides = [1, 1]} : vector<8x128xf32> to vector<8x32xf32>
    %193 = vector.extract_strided_slice %188 {offsets = [0, 96], sizes = [8, 32], strides = [1, 1]} : vector<8x128xf32> to vector<8x32xf32>
    %194 = arith.mulf %191, %178 : vector<8x32xf32>
    %195 = arith.mulf %190, %192 : vector<8x32xf32>
    %196 = arith.addf %194, %195 : vector<8x32xf32>
    %197 = math.tanh %196 : vector<8x32xf32>
    %198 = arith.mulf %193, %197 : vector<8x32xf32>
    %199 = vector.extract_strided_slice %160 {offsets = [16, 0], sizes = [8, 128], strides = [1, 1]} : vector<64x128xf32> to vector<8x128xf32>
    %cst_39 = arith.constant dense<0.000000e+00> : vector<8x128xf32>
    %200 = tpu.matmul %198, %156, %cst_39 {dimension_numbers = #tpu.dot_dimension_numbers<[1], [0], [0], [1], [0, 0, 1, 1], [], []>} : vector<8x32xf32>, vector<32x128xf32>, vector<8x128xf32> -> vector<8x128xf32>
    %201 = arith.addf %199, %200 : vector<8x128xf32>
    %202 = arith.negf %201 : vector<8x128xf32>
    %203 = math.exp %202 : vector<8x128xf32>
    %cst_40 = arith.constant 1.000000e+00 : f32
    %204 = vector.broadcast %cst_40 : f32 to vector<8x128xf32>
    %205 = arith.addf %204, %203 : vector<8x128xf32>
    %206 = arith.divf %204, %205 : vector<8x128xf32>
    %207 = math.tanh %201 : vector<8x128xf32>
    %208 = vector.extract_strided_slice %206 {offsets = [0, 0], sizes = [8, 32], strides = [1, 1]} : vector<8x128xf32> to vector<8x32xf32>
    %209 = vector.extract_strided_slice %206 {offsets = [0, 32], sizes = [8, 32], strides = [1, 1]} : vector<8x128xf32> to vector<8x32xf32>
    %210 = vector.extract_strided_slice %207 {offsets = [0, 64], sizes = [8, 32], strides = [1, 1]} : vector<8x128xf32> to vector<8x32xf32>
    %211 = vector.extract_strided_slice %206 {offsets = [0, 96], sizes = [8, 32], strides = [1, 1]} : vector<8x128xf32> to vector<8x32xf32>
    %212 = arith.mulf %209, %196 : vector<8x32xf32>
    %213 = arith.mulf %208, %210 : vector<8x32xf32>
    %214 = arith.addf %212, %213 : vector<8x32xf32>
    %215 = math.tanh %214 : vector<8x32xf32>
    %216 = arith.mulf %211, %215 : vector<8x32xf32>
    %217 = vector.extract_strided_slice %160 {offsets = [24, 0], sizes = [8, 128], strides = [1, 1]} : vector<64x128xf32> to vector<8x128xf32>
    %cst_41 = arith.constant dense<0.000000e+00> : vector<8x128xf32>
    %218 = tpu.matmul %216, %156, %cst_41 {dimension_numbers = #tpu.dot_dimension_numbers<[1], [0], [0], [1], [0, 0, 1, 1], [], []>} : vector<8x32xf32>, vector<32x128xf32>, vector<8x128xf32> -> vector<8x128xf32>
    %219 = arith.addf %217, %218 : vector<8x128xf32>
    %220 = arith.negf %219 : vector<8x128xf32>
    %221 = math.exp %220 : vector<8x128xf32>
    %cst_42 = arith.constant 1.000000e+00 : f32
    %222 = vector.broadcast %cst_42 : f32 to vector<8x128xf32>
    %223 = arith.addf %222, %221 : vector<8x128xf32>
    %224 = arith.divf %222, %223 : vector<8x128xf32>
    %225 = math.tanh %219 : vector<8x128xf32>
    %226 = vector.extract_strided_slice %224 {offsets = [0, 0], sizes = [8, 32], strides = [1, 1]} : vector<8x128xf32> to vector<8x32xf32>
    %227 = vector.extract_strided_slice %224 {offsets = [0, 32], sizes = [8, 32], strides = [1, 1]} : vector<8x128xf32> to vector<8x32xf32>
    %228 = vector.extract_strided_slice %225 {offsets = [0, 64], sizes = [8, 32], strides = [1, 1]} : vector<8x128xf32> to vector<8x32xf32>
    %229 = vector.extract_strided_slice %224 {offsets = [0, 96], sizes = [8, 32], strides = [1, 1]} : vector<8x128xf32> to vector<8x32xf32>
    %230 = arith.mulf %227, %214 : vector<8x32xf32>
    %231 = arith.mulf %226, %228 : vector<8x32xf32>
    %232 = arith.addf %230, %231 : vector<8x32xf32>
    %233 = math.tanh %232 : vector<8x32xf32>
    %234 = arith.mulf %229, %233 : vector<8x32xf32>
    %235 = vector.extract_strided_slice %160 {offsets = [32, 0], sizes = [8, 128], strides = [1, 1]} : vector<64x128xf32> to vector<8x128xf32>
    %cst_43 = arith.constant dense<0.000000e+00> : vector<8x128xf32>
    %236 = tpu.matmul %234, %156, %cst_43 {dimension_numbers = #tpu.dot_dimension_numbers<[1], [0], [0], [1], [0, 0, 1, 1], [], []>} : vector<8x32xf32>, vector<32x128xf32>, vector<8x128xf32> -> vector<8x128xf32>
    %237 = arith.addf %235, %236 : vector<8x128xf32>
    %238 = arith.negf %237 : vector<8x128xf32>
    %239 = math.exp %238 : vector<8x128xf32>
    %cst_44 = arith.constant 1.000000e+00 : f32
    %240 = vector.broadcast %cst_44 : f32 to vector<8x128xf32>
    %241 = arith.addf %240, %239 : vector<8x128xf32>
    %242 = arith.divf %240, %241 : vector<8x128xf32>
    %243 = math.tanh %237 : vector<8x128xf32>
    %244 = vector.extract_strided_slice %242 {offsets = [0, 0], sizes = [8, 32], strides = [1, 1]} : vector<8x128xf32> to vector<8x32xf32>
    %245 = vector.extract_strided_slice %242 {offsets = [0, 32], sizes = [8, 32], strides = [1, 1]} : vector<8x128xf32> to vector<8x32xf32>
    %246 = vector.extract_strided_slice %243 {offsets = [0, 64], sizes = [8, 32], strides = [1, 1]} : vector<8x128xf32> to vector<8x32xf32>
    %247 = vector.extract_strided_slice %242 {offsets = [0, 96], sizes = [8, 32], strides = [1, 1]} : vector<8x128xf32> to vector<8x32xf32>
    %248 = arith.mulf %245, %232 : vector<8x32xf32>
    %249 = arith.mulf %244, %246 : vector<8x32xf32>
    %250 = arith.addf %248, %249 : vector<8x32xf32>
    %251 = math.tanh %250 : vector<8x32xf32>
    %252 = arith.mulf %247, %251 : vector<8x32xf32>
    %253 = vector.extract_strided_slice %160 {offsets = [40, 0], sizes = [8, 128], strides = [1, 1]} : vector<64x128xf32> to vector<8x128xf32>
    %cst_45 = arith.constant dense<0.000000e+00> : vector<8x128xf32>
    %254 = tpu.matmul %252, %156, %cst_45 {dimension_numbers = #tpu.dot_dimension_numbers<[1], [0], [0], [1], [0, 0, 1, 1], [], []>} : vector<8x32xf32>, vector<32x128xf32>, vector<8x128xf32> -> vector<8x128xf32>
    %255 = arith.addf %253, %254 : vector<8x128xf32>
    %256 = arith.negf %255 : vector<8x128xf32>
    %257 = math.exp %256 : vector<8x128xf32>
    %cst_46 = arith.constant 1.000000e+00 : f32
    %258 = vector.broadcast %cst_46 : f32 to vector<8x128xf32>
    %259 = arith.addf %258, %257 : vector<8x128xf32>
    %260 = arith.divf %258, %259 : vector<8x128xf32>
    %261 = math.tanh %255 : vector<8x128xf32>
    %262 = vector.extract_strided_slice %260 {offsets = [0, 0], sizes = [8, 32], strides = [1, 1]} : vector<8x128xf32> to vector<8x32xf32>
    %263 = vector.extract_strided_slice %260 {offsets = [0, 32], sizes = [8, 32], strides = [1, 1]} : vector<8x128xf32> to vector<8x32xf32>
    %264 = vector.extract_strided_slice %261 {offsets = [0, 64], sizes = [8, 32], strides = [1, 1]} : vector<8x128xf32> to vector<8x32xf32>
    %265 = vector.extract_strided_slice %260 {offsets = [0, 96], sizes = [8, 32], strides = [1, 1]} : vector<8x128xf32> to vector<8x32xf32>
    %266 = arith.mulf %263, %250 : vector<8x32xf32>
    %267 = arith.mulf %262, %264 : vector<8x32xf32>
    %268 = arith.addf %266, %267 : vector<8x32xf32>
    %269 = math.tanh %268 : vector<8x32xf32>
    %270 = arith.mulf %265, %269 : vector<8x32xf32>
    %271 = vector.extract_strided_slice %160 {offsets = [48, 0], sizes = [8, 128], strides = [1, 1]} : vector<64x128xf32> to vector<8x128xf32>
    %cst_47 = arith.constant dense<0.000000e+00> : vector<8x128xf32>
    %272 = tpu.matmul %270, %156, %cst_47 {dimension_numbers = #tpu.dot_dimension_numbers<[1], [0], [0], [1], [0, 0, 1, 1], [], []>} : vector<8x32xf32>, vector<32x128xf32>, vector<8x128xf32> -> vector<8x128xf32>
    %273 = arith.addf %271, %272 : vector<8x128xf32>
    %274 = arith.negf %273 : vector<8x128xf32>
    %275 = math.exp %274 : vector<8x128xf32>
    %cst_48 = arith.constant 1.000000e+00 : f32
    %276 = vector.broadcast %cst_48 : f32 to vector<8x128xf32>
    %277 = arith.addf %276, %275 : vector<8x128xf32>
    %278 = arith.divf %276, %277 : vector<8x128xf32>
    %279 = math.tanh %273 : vector<8x128xf32>
    %280 = vector.extract_strided_slice %278 {offsets = [0, 0], sizes = [8, 32], strides = [1, 1]} : vector<8x128xf32> to vector<8x32xf32>
    %281 = vector.extract_strided_slice %278 {offsets = [0, 32], sizes = [8, 32], strides = [1, 1]} : vector<8x128xf32> to vector<8x32xf32>
    %282 = vector.extract_strided_slice %279 {offsets = [0, 64], sizes = [8, 32], strides = [1, 1]} : vector<8x128xf32> to vector<8x32xf32>
    %283 = vector.extract_strided_slice %278 {offsets = [0, 96], sizes = [8, 32], strides = [1, 1]} : vector<8x128xf32> to vector<8x32xf32>
    %284 = arith.mulf %281, %268 : vector<8x32xf32>
    %285 = arith.mulf %280, %282 : vector<8x32xf32>
    %286 = arith.addf %284, %285 : vector<8x32xf32>
    %287 = math.tanh %286 : vector<8x32xf32>
    %288 = arith.mulf %283, %287 : vector<8x32xf32>
    %289 = vector.extract_strided_slice %160 {offsets = [56, 0], sizes = [8, 128], strides = [1, 1]} : vector<64x128xf32> to vector<8x128xf32>
    %cst_49 = arith.constant dense<0.000000e+00> : vector<8x128xf32>
    %290 = tpu.matmul %288, %156, %cst_49 {dimension_numbers = #tpu.dot_dimension_numbers<[1], [0], [0], [1], [0, 0, 1, 1], [], []>} : vector<8x32xf32>, vector<32x128xf32>, vector<8x128xf32> -> vector<8x128xf32>
    %291 = arith.addf %289, %290 : vector<8x128xf32>
    %292 = arith.negf %291 : vector<8x128xf32>
    %293 = math.exp %292 : vector<8x128xf32>
    %cst_50 = arith.constant 1.000000e+00 : f32
    %294 = vector.broadcast %cst_50 : f32 to vector<8x128xf32>
    %295 = arith.addf %294, %293 : vector<8x128xf32>
    %296 = arith.divf %294, %295 : vector<8x128xf32>
    %297 = math.tanh %291 : vector<8x128xf32>
    %298 = vector.extract_strided_slice %296 {offsets = [0, 0], sizes = [8, 32], strides = [1, 1]} : vector<8x128xf32> to vector<8x32xf32>
    %299 = vector.extract_strided_slice %296 {offsets = [0, 32], sizes = [8, 32], strides = [1, 1]} : vector<8x128xf32> to vector<8x32xf32>
    %300 = vector.extract_strided_slice %297 {offsets = [0, 64], sizes = [8, 32], strides = [1, 1]} : vector<8x128xf32> to vector<8x32xf32>
    %301 = vector.extract_strided_slice %296 {offsets = [0, 96], sizes = [8, 32], strides = [1, 1]} : vector<8x128xf32> to vector<8x32xf32>
    %302 = arith.mulf %299, %286 : vector<8x32xf32>
    %303 = arith.mulf %298, %300 : vector<8x32xf32>
    %304 = arith.addf %302, %303 : vector<8x32xf32>
    %305 = math.tanh %304 : vector<8x32xf32>
    %306 = arith.mulf %301, %305 : vector<8x32xf32>
    %c0_51 = arith.constant 0 : index
    %c0_52 = arith.constant 0 : index
    %307 = vector.load %arg8[%c0_51, %c0_52] : memref<32x128xf32, #tpu.memory_space<vmem>>, vector<32x128xf32>
    %c0_53 = arith.constant 0 : index
    %c0_54 = arith.constant 0 : index
    %308 = vector.load %arg9[%c0_53, %c0_54] : memref<1x128xf32, #tpu.memory_space<vmem>>, vector<1x128xf32>
    %cst_55 = arith.constant dense<0.000000e+00> : vector<8x128xf32>
    %309 = tpu.matmul %306, %307, %cst_55 {dimension_numbers = #tpu.dot_dimension_numbers<[1], [0], [0], [1], [0, 0, 1, 1], [], []>} : vector<8x32xf32>, vector<32x128xf32>, vector<8x128xf32> -> vector<8x128xf32>
    %310 = vector.broadcast %308 : vector<1x128xf32> to vector<8x128xf32>
    %311 = arith.addf %309, %310 : vector<8x128xf32>
    %cst_56 = arith.constant dense<0xFF800000> : vector<8xf32>
    %312 = vector.multi_reduction <maximumf>, %311, %cst_56 [1] : vector<8x128xf32> to vector<8xf32>
    %313 = vector.shape_cast %312 : vector<8xf32> to vector<8x1xf32>
    %314 = vector.broadcast %313 : vector<8x1xf32> to vector<8x128xf32>
    %315 = arith.subf %311, %314 : vector<8x128xf32>
    %316 = math.exp %315 : vector<8x128xf32>
    %cst_57 = arith.constant dense<0.000000e+00> : vector<8xf32>
    %317 = vector.multi_reduction <add>, %316, %cst_57 [1] : vector<8x128xf32> to vector<8xf32>
    %318 = vector.shape_cast %317 : vector<8xf32> to vector<8x1xf32>
    %319 = math.log %318 : vector<8x1xf32>
    %320 = vector.broadcast %319 : vector<8x1xf32> to vector<8x128xf32>
    %321 = arith.subf %315, %320 : vector<8x128xf32>
    %c0_58 = arith.constant 0 : index
    %c0_59 = arith.constant 0 : index
    %322 = vector.load %arg10[%c0_58, %c0_59] : memref<8x128xf32, #tpu.memory_space<vmem>>, vector<8x128xf32>
    tpu.vector_store %arg10[%c0_58, %c0_59], %321 {strides = array<i32>} : memref<8x128xf32, #tpu.memory_space<vmem>>, vector<8x128xf32>,
    return
  }
  func.func @transform_0(%arg0: i32) -> (i32, i32, i32) {
    %c0_i32 = arith.constant 0 : i32
    %c0_i32_0 = arith.constant 0 : i32
    %c0_i32_1 = arith.constant 0 : i32
    return %c0_i32, %arg0, %c0_i32_0 : i32, i32, i32
  }
  func.func @transform_1(%arg0: i32) -> (i32, i32) {
    %c0_i32 = arith.constant 0 : i32
    %c0_i32_0 = arith.constant 0 : i32
    %c0_i32_1 = arith.constant 0 : i32
    return %c0_i32, %c0_i32_0 : i32, i32
  }
  func.func @transform_2(%arg0: i32) -> (i32, i32) {
    %c0_i32 = arith.constant 0 : i32
    %c0_i32_0 = arith.constant 0 : i32
    %c0_i32_1 = arith.constant 0 : i32
    return %c0_i32, %c0_i32_0 : i32, i32
  }
  func.func @transform_3(%arg0: i32) -> (i32, i32) {
    %c0_i32 = arith.constant 0 : i32
    %c0_i32_0 = arith.constant 0 : i32
    %c0_i32_1 = arith.constant 0 : i32
    return %c0_i32, %c0_i32_0 : i32, i32
  }
  func.func @transform_4(%arg0: i32) -> (i32, i32) {
    %c0_i32 = arith.constant 0 : i32
    %c0_i32_0 = arith.constant 0 : i32
    %c0_i32_1 = arith.constant 0 : i32
    return %c0_i32, %c0_i32_0 : i32, i32
  }
  func.func @transform_5(%arg0: i32) -> (i32, i32) {
    %c0_i32 = arith.constant 0 : i32
    %c0_i32_0 = arith.constant 0 : i32
    %c0_i32_1 = arith.constant 0 : i32
    return %c0_i32, %c0_i32_0 : i32, i32
  }
  func.func @transform_6(%arg0: i32) -> (i32, i32) {
    %c0_i32 = arith.constant 0 : i32
    %c0_i32_0 = arith.constant 0 : i32
    %c0_i32_1 = arith.constant 0 : i32
    return %c0_i32, %c0_i32_0 : i32, i32
  }
  func.func @transform_7(%arg0: i32) -> (i32, i32) {
    %c0_i32 = arith.constant 0 : i32
    %c0_i32_0 = arith.constant 0 : i32
    %c0_i32_1 = arith.constant 0 : i32
    return %c0_i32, %c0_i32_0 : i32, i32
  }
  func.func @transform_8(%arg0: i32) -> (i32, i32) {
    %c0_i32 = arith.constant 0 : i32
    %c0_i32_0 = arith.constant 0 : i32
    %c0_i32_1 = arith.constant 0 : i32
    return %c0_i32, %c0_i32_0 : i32, i32
  }
  func.func @transform_9(%arg0: i32) -> (i32, i32) {
    %c0_i32 = arith.constant 0 : i32
    %c0_i32_0 = arith.constant 0 : i32
    return %arg0, %c0_i32 : i32, i32
  }
}

</mosaic_0001>

<llo_original>
// kernel: mnist_lstm_forward.1
$region0: #{mnist_lstm_forward.1}
  #allocation0 [shape = 'u32[]', space=smem, size = 0x4, offset = 0x4, fixed_abs, tag = 'smem constant byte address 0x4 - core index']
  #allocation1 [shape = 'u32[144,128]{1,0:T(1,128)}', space=vmem, size = 0x12000, scoped, tag = 'internal scratch']
  %s0 = inlined_call_operand.vmem [shape: f32[8,8,16], index: 0, kind: input, shape index: {}]
  %s1 = inlined_call_operand.vmem [shape: f32[16,128], index: 1, kind: input, shape index: {}]
  %s2 = inlined_call_operand.vmem [shape: f32[32,128], index: 2, kind: input, shape index: {}]
  %s3 = inlined_call_operand.vmem [shape: f32[1,128], index: 3, kind: input, shape index: {}]
  %s4 = inlined_call_operand.vmem [shape: f32[32,128], index: 4, kind: input, shape index: {}]
  %s5 = inlined_call_operand.vmem [shape: f32[32,128], index: 5, kind: input, shape index: {}]
  %s6 = inlined_call_operand.vmem [shape: f32[1,128], index: 6, kind: input, shape index: {}]
  %s7 = inlined_call_operand.vmem [shape: f32[32,128], index: 7, kind: input, shape index: {}]
  %s8 = inlined_call_operand.vmem [shape: f32[1,128], index: 8, kind: input, shape index: {}]
  %s9 = inlined_call_operand.vmem [shape: f32[8,128], index: 9, kind: output, shape index: {}]
  %s10 = sld [smem:[#allocation0]]
  $region46: #{mnist_lstm_forward.1} parent=0
    _
  %s12 = ssub.s32 1, %s10
  %s13 = scalar_select 0, %s12, %s10
  // Predicated region
  $region2: #{mnist_lstm_forward.1} parent=0 // pred_check
    _
  $region3: #{mnist_lstm_forward.1} parent=0 // pred_check_branch
    %15 = sbr.rel (0) target = $region5
  $region4: #{mnist_lstm_forward.1} parent=0 // pred_region
    _
  $region5: #{mnist_lstm_forward.1} parent=0 // pred_fallthru
    _
  // Predicated region
  $region6: #{mnist_lstm_forward.1} parent=0 // pred_check
    _
  $region7: #{mnist_lstm_forward.1} parent=0 // pred_check_branch
    %17 = sbr.rel (0) target = $region9
  $region8: #{mnist_lstm_forward.1} parent=0 // pred_region
    _
  $region9: #{mnist_lstm_forward.1} parent=0 // pred_fallthru
    _
  // Predicated region
  $region10: #{mnist_lstm_forward.1} parent=0 // pred_check
    _
  $region11: #{mnist_lstm_forward.1} parent=0 // pred_check_branch
    %19 = sbr.rel (0) target = $region13
  $region12: #{mnist_lstm_forward.1} parent=0 // pred_region
    _
  $region13: #{mnist_lstm_forward.1} parent=0 // pred_fallthru
    _
  // Predicated region
  $region14: #{mnist_lstm_forward.1} parent=0 // pred_check
    _
  $region15: #{mnist_lstm_forward.1} parent=0 // pred_check_branch
    %21 = sbr.rel (0) target = $region17
  $region16: #{mnist_lstm_forward.1} parent=0 // pred_region
    _
  $region17: #{mnist_lstm_forward.1} parent=0 // pred_fallthru
    _
  // Predicated region
  $region18: #{mnist_lstm_forward.1} parent=0 // pred_check
    _
  $region19: #{mnist_lstm_forward.1} parent=0 // pred_check_branch
    %23 = sbr.rel (0) target = $region21
  $region20: #{mnist_lstm_forward.1} parent=0 // pred_region
    _
  $region21: #{mnist_lstm_forward.1} parent=0 // pred_fallthru
    _
  // Predicated region
  $region22: #{mnist_lstm_forward.1} parent=0 // pred_check
    _
  $region23: #{mnist_lstm_forward.1} parent=0 // pred_check_branch
    %25 = sbr.rel (0) target = $region25
  $region24: #{mnist_lstm_forward.1} parent=0 // pred_region
    _
  $region25: #{mnist_lstm_forward.1} parent=0 // pred_fallthru
    _
  // Predicated region
  $region26: #{mnist_lstm_forward.1} parent=0 // pred_check
    _
  $region27: #{mnist_lstm_forward.1} parent=0 // pred_check_branch
    %27 = sbr.rel (0) target = $region29
  $region28: #{mnist_lstm_forward.1} parent=0 // pred_region
    _
  $region29: #{mnist_lstm_forward.1} parent=0 // pred_fallthru
    _
  // Predicated region
  $region30: #{mnist_lstm_forward.1} parent=0 // pred_check
    _
  $region31: #{mnist_lstm_forward.1} parent=0 // pred_check_branch
    %29 = sbr.rel (0) target = $region33
  $region32: #{mnist_lstm_forward.1} parent=0 // pred_region
    _
  $region33: #{mnist_lstm_forward.1} parent=0 // pred_fallthru
    _
  // Predicated region
  $region34: #{mnist_lstm_forward.1} parent=0 // pred_check
    _
  $region35: #{mnist_lstm_forward.1} parent=0 // pred_check_branch
    %31 = sbr.rel (0) target = $region37
  $region36: #{mnist_lstm_forward.1} parent=0 // pred_region
    _
  $region37: #{mnist_lstm_forward.1} parent=0 // pred_fallthru
    _
  %v32 = vld [vmem:[%s0] sm:$0xff]
  %v33 = vld [vmem:[%s0 + $0x8] sm:$0xff]
  %v34 = vld [vmem:[%s0 + $0x10] sm:$0xff]
  %v35 = vld [vmem:[%s0 + $0x18] sm:$0xff]
  %v36 = vld [vmem:[%s0 + $0x20] sm:$0xff]
  %v37 = vld [vmem:[%s0 + $0x28] sm:$0xff]
  %v38 = vld [vmem:[%s0 + $0x30] sm:$0xff]
  %v39 = vld [vmem:[%s0 + $0x38] sm:$0xff]
  %v40 = vld [vmem:[%s1] sm:$0xff]
  %v41 = vld [vmem:[%s1 + $0x8] sm:$0xff]
  %v42 = vld [vmem:[%s2] sm:$0xff]
  %v43 = vld [vmem:[%s2 + $0x8] sm:$0xff]
  %v44 = vld [vmem:[%s2 + $0x10] sm:$0xff]
  %v45 = vld [vmem:[%s2 + $0x18] sm:$0xff]
  %v46 = vld [vmem:[%s3] sm:$0x1]
  %v48 = vlaneseq
  %v49 = vshrl.u32 %v48, 7
  %v50 = vsub.s32 0, %v49
  %v51 = vrot.slane %v46, %v50
  %vm53 = vcmask 130048
  %v55 = vsel %vm53, %v32, 0
  %v58 = vsel %vm53, %v33, 0
  %v61 = vsel %vm53, %v34, 0
  %v64 = vsel %vm53, %v35, 0
  %v67 = vsel %vm53, %v36, 0
  %v70 = vsel %vm53, %v37, 0
  %v73 = vsel %vm53, %v38, 0
  %v76 = vsel %vm53, %v39, 0
  %78 = vmatprep.subr.mxu0 0.0
  %79 = vmatpush1.msra.mxu0 %v40
  %80 = vmatprep.subr.mxu0 0.0
  %81 = vmatpush1.msra.mxu0 %v41
  %82 = vmatprep.subr.mxu0 0.0
  %83 = vmatpush1.msra.mxu0 0.0
  %84 = vmatprep.subr.mxu0 0.0
  %85 = vmatpush1.msra.mxu0 0.0
  %86 = vmatprep.subr.mxu0 0.0
  %87 = vmatpush1.msra.mxu0 0.0
  %88 = vmatprep.subr.mxu0 0.0
  %89 = vmatpush1.msra.mxu0 0.0
  %90 = vmatprep.subr.mxu0 0.0
  %91 = vmatpush1.msra.mxu0 0.0
  %92 = vmatprep.subr.mxu0 0.0
  %93 = vmatpush1.msra.mxu0 0.0
  %94 = vmatprep.subr.mxu0 0.0
  %95 = vmatpush1.msra.mxu0 0.0
  %96 = vmatprep.subr.mxu0 0.0
  %97 = vmatpush1.msra.mxu0 0.0
  %98 = vmatprep.subr.mxu0 0.0
  %99 = vmatpush1.msra.mxu0 0.0
  %100 = vmatprep.subr.mxu0 0.0
  %101 = vmatpush1.msra.mxu0 0.0
  %102 = vmatprep.subr.mxu0 0.0
  %103 = vmatpush1.msra.mxu0 0.0
  %104 = vmatprep.subr.mxu0 0.0
  %105 = vmatpush1.msra.mxu0 0.0
  %106 = vmatprep.subr.mxu0 0.0
  %107 = vmatpush1.msra.mxu0 0.0
  %108 = vmatprep.subr.mxu0 0.0
  %109 = vmatpush1.msra.mxu0 0.0
  %110 = vmatprep.subr.mxu0 0.0
  %111 = vmatpush1.msra.mxu0 0.0
  %112 = vmatprep.subr.mxu0 0.0
  %113 = vmatpush1.msra.mxu0 0.0
  %114 = vmatprep.subr.mxu0 0.0
  %115 = vmatpush1.msra.mxu0 0.0
  %116 = vmatprep.subr.mxu0 0.0
  %117 = vmatpush1.msra.mxu0 0.0
  %118 = vmatprep.subr.mxu0 0.0
  %119 = vmatpush1.msra.mxu0 0.0
  %120 = vmatprep.subr.mxu0 0.0
  %121 = vmatpush1.msra.mxu0 0.0
  %122 = vmatprep.subr.mxu0 0.0
  %123 = vmatpush1.msra.mxu0 0.0
  %124 = vmatprep.subr.mxu0 0.0
  %125 = vmatpush1.msra.mxu0 0.0
  %126 = vmatprep.subr.mxu0 0.0
  %127 = vmatpush1.msra.mxu0 0.0
  %128 = vmatprep.subr.mxu0 0.0
  %129 = vmatpush1.msra.mxu0 0.0
  %130 = vmatprep.subr.mxu0 0.0
  %131 = vmatpush1.msra.mxu0 0.0
  %132 = vmatprep.subr.mxu0 0.0
  %133 = vmatpush1.msra.mxu0 0.0
  %134 = vmatprep.subr.mxu0 0.0
  %135 = vmatpush1.msra.mxu0 0.0
  %136 = vmatprep.subr.mxu0 0.0
  %137 = vmatpush1.msra.mxu0 0.0
  %138 = vmatprep.subr.mxu0 0.0
  %139 = vmatpush1.msra.mxu0 0.0
  %140 = vmatprep.subr.mxu0 0.0
  %141 = vmatpush1.msra.mxu0 0.0
  %142 = vmatprep.mubr.f32.mxu0 0.0
  %143 = vmatmul.mubr.f32.gmra.mrb[0].mxu0 %v55
  %v144 = vpop.f32.mrb[0].mxu0
  %v145 = vadd.f32 %v51, %v144
  %v146 = vpop.f32.mrb[0].mxu0
  %147 = vmatprep.mubr.f32.mxu0 0.0
  %148 = vmatmul.mubr.f32.gmra.mrb[0].mxu0 %v58
  %v149 = vpop.f32.mrb[0].mxu0
  %v150 = vadd.f32 %v51, %v149
  %v151 = vpop.f32.mrb[0].mxu0
  %152 = vmatprep.mubr.f32.mxu0 0.0
  %153 = vmatmul.mubr.f32.gmra.mrb[0].mxu0 %v61
  %v154 = vpop.f32.mrb[0].mxu0
  %v155 = vadd.f32 %v51, %v154
  %v156 = vpop.f32.mrb[0].mxu0
  %157 = vmatprep.mubr.f32.mxu0 0.0
  %158 = vmatmul.mubr.f32.gmra.mrb[0].mxu0 %v64
  %v159 = vpop.f32.mrb[0].mxu0
  %v160 = vadd.f32 %v51, %v159
  %v161 = vpop.f32.mrb[0].mxu0
  %162 = vmatprep.mubr.f32.mxu0 0.0
  %163 = vmatmul.mubr.f32.gmra.mrb[0].mxu0 %v67
  %v164 = vpop.f32.mrb[0].mxu0
  %v165 = vadd.f32 %v51, %v164
  %v166 = vpop.f32.mrb[0].mxu0
  %167 = vmatprep.mubr.f32.mxu0 0.0
  %168 = vmatmul.mubr.f32.gmra.mrb[0].mxu0 %v70
  %v169 = vpop.f32.mrb[0].mxu0
  %v170 = vadd.f32 %v51, %v169
  %v171 = vpop.f32.mrb[0].mxu0
  %172 = vmatprep.mubr.f32.mxu0 0.0
  %173 = vmatmul.mubr.f32.gmra.mrb[0].mxu0 %v73
  %v174 = vpop.f32.mrb[0].mxu0
  %v175 = vadd.f32 %v51, %v174
  %v176 = vpop.f32.mrb[0].mxu0
  %177 = vmatprep.mubr.f32.mxu0 0.0
  %178 = vmatmul.mubr.f32.gmra.mrb[0].mxu0 %v76
  %v179 = vpop.f32.mrb[0].mxu0
  %v180 = vadd.f32 %v51, %v179
  %v181 = vpop.f32.mrb[0].mxu0
  %182 = vdwg.mxu0
  %vm183 = vcmask 261120
  %v185 = vsel %vm183, 0.0, 0
  %187 = vmatprep.subr.mxu0 0.0
  %188 = vmatpush1.msra.mxu0 %v42
  %189 = vmatprep.subr.mxu0 0.0
  %190 = vmatpush1.msra.mxu0 %v43
  %191 = vmatprep.subr.mxu0 0.0
  %192 = vmatpush1.msra.mxu0 %v44
  %193 = vmatprep.subr.mxu0 0.0
  %194 = vmatpush1.msra.mxu0 %v45
  %195 = vmatprep.subr.mxu0 0.0
  %196 = vmatpush1.msra.mxu0 0.0
  %197 = vmatprep.subr.mxu0 0.0
  %198 = vmatpush1.msra.mxu0 0.0
  %199 = vmatprep.subr.mxu0 0.0
  %200 = vmatpush1.msra.mxu0 0.0
  %201 = vmatprep.subr.mxu0 0.0
  %202 = vmatpush1.msra.mxu0 0.0
  %203 = vmatprep.subr.mxu0 0.0
  %204 = vmatpush1.msra.mxu0 0.0
  %205 = vmatprep.subr.mxu0 0.0
  %206 = vmatpush1.msra.mxu0 0.0
  %207 = vmatprep.subr.mxu0 0.0
  %208 = vmatpush1.msra.mxu0 0.0
  %209 = vmatprep.subr.mxu0 0.0
  %210 = vmatpush1.msra.mxu0 0.0
  %211 = vmatprep.subr.mxu0 0.0
  %212 = vmatpush1.msra.mxu0 0.0
  %213 = vmatprep.subr.mxu0 0.0
  %214 = vmatpush1.msra.mxu0 0.0
  %215 = vmatprep.subr.mxu0 0.0
  %216 = vmatpush1.msra.mxu0 0.0
  %217 = vmatprep.subr.mxu0 0.0
  %218 = vmatpush1.msra.mxu0 0.0
  %219 = vmatprep.subr.mxu0 0.0
  %220 = vmatpush1.msra.mxu0 0.0
  %221 = vmatprep.subr.mxu0 0.0
  %222 = vmatpush1.msra.mxu0 0.0
  %223 = vmatprep.subr.mxu0 0.0
  %224 = vmatpush1.msra.mxu0 0.0
  %225 = vmatprep.subr.mxu0 0.0
  %226 = vmatpush1.msra.mxu0 0.0
  %227 = vmatprep.subr.mxu0 0.0
  %228 = vmatpush1.msra.mxu0 0.0
  %229 = vmatprep.subr.mxu0 0.0
  %230 = vmatpush1.msra.mxu0 0.0
  %231 = vmatprep.subr.mxu0 0.0
  %232 = vmatpush1.msra.mxu0 0.0
  %233 = vmatprep.subr.mxu0 0.0
  %234 = vmatpush1.msra.mxu0 0.0
  %235 = vmatprep.subr.mxu0 0.0
  %236 = vmatpush1.msra.mxu0 0.0
  %237 = vmatprep.subr.mxu0 0.0
  %238 = vmatpush1.msra.mxu0 0.0
  %239 = vmatprep.subr.mxu0 0.0
  %240 = vmatpush1.msra.mxu0 0.0
  %241 = vmatprep.subr.mxu0 0.0
  %242 = vmatpush1.msra.mxu0 0.0
  %243 = vmatprep.subr.mxu0 0.0
  %244 = vmatpush1.msra.mxu0 0.0
  %245 = vmatprep.subr.mxu0 0.0
  %246 = vmatpush1.msra.mxu0 0.0
  %247 = vmatprep.subr.mxu0 0.0
  %248 = vmatpush1.msra.mxu0 0.0
  %249 = vmatprep.subr.mxu0 0.0
  %250 = vmatpush1.msra.mxu0 0.0
  %251 = vmatprep.mubr.f32.mxu0 0.0
  %252 = vmatmul.mubr.f32.gmra.mrb[0].mxu0 %v185
  %v253 = vpop.f32.mrb[0].mxu0
  %v254 = vadd.f32 0.0, %v253
  %v255 = vpop.f32.mrb[0].mxu0
  %256 = vdwg.mxu0
  %v257 = vadd.f32 %v145, %v254
  %v258 = vxor.u32 %v257, 2147483648
  %v259 = vmul.f32 %v258, 1.442695
  %v260 = vpow.pop %v259
  %v261 = vadd.f32 %v260, 1.0
  %v262 = vrcp.pop %v261
  %v263 = vmul.f32 1.0, %v262
  %v264 = vtanh.pop %v257
  %v265 = vmul.f32 %v263, 0.0
  %267 = vrot.lane.b32.xlu0 %v264, 64
  %v268 = vpop.permute.xlu0 %267
  %v270 = vmul.f32 %v263, %v268
  %272 = vrot.lane.b32.xlu0 %v270, 32
  %v273 = vpop.permute.xlu0 %272
  %v275 = vadd.f32 %v265, %v273
  %v276 = vtanh.pop %v275
  %278 = vrot.lane.b32.xlu0 %v276, 64
  %v279 = vpop.permute.xlu0 %278
  %v281 = vmul.f32 %v263, %v279
  %283 = vrot.lane.b32.xlu0 %v281, 32
  %v284 = vpop.permute.xlu0 %283
  %v285 = vsel %vm183, %v284, 0
  %287 = vmatprep.subr.mxu0 0.0
  %288 = vmatpush1.msra.mxu0 %v42
  %289 = vmatprep.subr.mxu0 0.0
  %290 = vmatpush1.msra.mxu0 %v43
  %291 = vmatprep.subr.mxu0 0.0
  %292 = vmatpush1.msra.mxu0 %v44
  %293 = vmatprep.subr.mxu0 0.0
  %294 = vmatpush1.msra.mxu0 %v45
  %295 = vmatprep.subr.mxu0 0.0
  %296 = vmatpush1.msra.mxu0 0.0
  %297 = vmatprep.subr.mxu0 0.0
  %298 = vmatpush1.msra.mxu0 0.0
  %299 = vmatprep.subr.mxu0 0.0
  %300 = vmatpush1.msra.mxu0 0.0
  %301 = vmatprep.subr.mxu0 0.0
  %302 = vmatpush1.msra.mxu0 0.0
  %303 = vmatprep.subr.mxu0 0.0
  %304 = vmatpush1.msra.mxu0 0.0
  %305 = vmatprep.subr.mxu0 0.0
  %306 = vmatpush1.msra.mxu0 0.0
  %307 = vmatprep.subr.mxu0 0.0
  %308 = vmatpush1.msra.mxu0 0.0
  %309 = vmatprep.subr.mxu0 0.0
  %310 = vmatpush1.msra.mxu0 0.0
  %311 = vmatprep.subr.mxu0 0.0
  %312 = vmatpush1.msra.mxu0 0.0
  %313 = vmatprep.subr.mxu0 0.0
  %314 = vmatpush1.msra.mxu0 0.0
  %315 = vmatprep.subr.mxu0 0.0
  %316 = vmatpush1.msra.mxu0 0.0
  %317 = vmatprep.subr.mxu0 0.0
  %318 = vmatpush1.msra.mxu0 0.0
  %319 = vmatprep.subr.mxu0 0.0
  %320 = vmatpush1.msra.mxu0 0.0
  %321 = vmatprep.subr.mxu0 0.0
  %322 = vmatpush1.msra.mxu0 0.0
  %323 = vmatprep.subr.mxu0 0.0
  %324 = vmatpush1.msra.mxu0 0.0
  %325 = vmatprep.subr.mxu0 0.0
  %326 = vmatpush1.msra.mxu0 0.0
  %327 = vmatprep.subr.mxu0 0.0
  %328 = vmatpush1.msra.mxu0 0.0
  %329 = vmatprep.subr.mxu0 0.0
  %330 = vmatpush1.msra.mxu0 0.0
  %331 = vmatprep.subr.mxu0 0.0
  %332 = vmatpush1.msra.mxu0 0.0
  %333 = vmatprep.subr.mxu0 0.0
  %334 = vmatpush1.msra.mxu0 0.0
  %335 = vmatprep.subr.mxu0 0.0
  %336 = vmatpush1.msra.mxu0 0.0
  %337 = vmatprep.subr.mxu0 0.0
  %338 = vmatpush1.msra.mxu0 0.0
  %339 = vmatprep.subr.mxu0 0.0
  %340 = vmatpush1.msra.mxu0 0.0
  %341 = vmatprep.subr.mxu0 0.0
  %342 = vmatpush1.msra.mxu0 0.0
  %343 = vmatprep.subr.mxu0 0.0
  %344 = vmatpush1.msra.mxu0 0.0
  %345 = vmatprep.subr.mxu0 0.0
  %346 = vmatpush1.msra.mxu0 0.0
  %347 = vmatprep.subr.mxu0 0.0
  %348 = vmatpush1.msra.mxu0 0.0
  %349 = vmatprep.subr.mxu0 0.0
  %350 = vmatpush1.msra.mxu0 0.0
  %351 = vmatprep.mubr.f32.mxu0 0.0
  %352 = vmatmul.mubr.f32.gmra.mrb[0].mxu0 %v285
  %v353 = vpop.f32.mrb[0].mxu0
  %v354 = vadd.f32 0.0, %v353
  %v355 = vpop.f32.mrb[0].mxu0
  %356 = vdwg.mxu0
  %v357 = vadd.f32 %v150, %v354
  %v358 = vxor.u32 %v357, 2147483648
  %v359 = vmul.f32 %v358, 1.442695
  %v360 = vpow.pop %v359
  %v361 = vadd.f32 %v360, 1.0
  %v362 = vrcp.pop %v361
  %v363 = vmul.f32 1.0, %v362
  %v364 = vtanh.pop %v357
  %v365 = vmul.f32 %v363, %v275
  %367 = vrot.lane.b32.xlu0 %v364, 64
  %v368 = vpop.permute.xlu0 %367
  %v370 = vmul.f32 %v363, %v368
  %372 = vrot.lane.b32.xlu0 %v370, 32
  %v373 = vpop.permute.xlu0 %372
  %v375 = vadd.f32 %v365, %v373
  %v376 = vtanh.pop %v375
  %378 = vrot.lane.b32.xlu0 %v376, 64
  %v379 = vpop.permute.xlu0 %378
  %v381 = vmul.f32 %v363, %v379
  %383 = vrot.lane.b32.xlu0 %v381, 32
  %v384 = vpop.permute.xlu0 %383
  %v385 = vsel %vm183, %v384, 0
  %387 = vmatprep.subr.mxu0 0.0
  %388 = vmatpush1.msra.mxu0 %v42
  %389 = vmatprep.subr.mxu0 0.0
  %390 = vmatpush1.msra.mxu0 %v43
  %391 = vmatprep.subr.mxu0 0.0
  %392 = vmatpush1.msra.mxu0 %v44
  %393 = vmatprep.subr.mxu0 0.0
  %394 = vmatpush1.msra.mxu0 %v45
  %395 = vmatprep.subr.mxu0 0.0
  %396 = vmatpush1.msra.mxu0 0.0
  %397 = vmatprep.subr.mxu0 0.0
  %398 = vmatpush1.msra.mxu0 0.0
  %399 = vmatprep.subr.mxu0 0.0
  %400 = vmatpush1.msra.mxu0 0.0
  %401 = vmatprep.subr.mxu0 0.0
  %402 = vmatpush1.msra.mxu0 0.0
  %403 = vmatprep.subr.mxu0 0.0
  %404 = vmatpush1.msra.mxu0 0.0
  %405 = vmatprep.subr.mxu0 0.0
  %406 = vmatpush1.msra.mxu0 0.0
  %407 = vmatprep.subr.mxu0 0.0
  %408 = vmatpush1.msra.mxu0 0.0
  %409 = vmatprep.subr.mxu0 0.0
  %410 = vmatpush1.msra.mxu0 0.0
  %411 = vmatprep.subr.mxu0 0.0
  %412 = vmatpush1.msra.mxu0 0.0
  %413 = vmatprep.subr.mxu0 0.0
  %414 = vmatpush1.msra.mxu0 0.0
  %415 = vmatprep.subr.mxu0 0.0
  %416 = vmatpush1.msra.mxu0 0.0
  %417 = vmatprep.subr.mxu0 0.0
  %418 = vmatpush1.msra.mxu0 0.0
  %419 = vmatprep.subr.mxu0 0.0
  %420 = vmatpush1.msra.mxu0 0.0
  %421 = vmatprep.subr.mxu0 0.0
  %422 = vmatpush1.msra.mxu0 0.0
  %423 = vmatprep.subr.mxu0 0.0
  %424 = vmatpush1.msra.mxu0 0.0
  %425 = vmatprep.subr.mxu0 0.0
  %426 = vmatpush1.msra.mxu0 0.0
  %427 = vmatprep.subr.mxu0 0.0
  %428 = vmatpush1.msra.mxu0 0.0
  %429 = vmatprep.subr.mxu0 0.0
  %430 = vmatpush1.msra.mxu0 0.0
  %431 = vmatprep.subr.mxu0 0.0
  %432 = vmatpush1.msra.mxu0 0.0
  %433 = vmatprep.subr.mxu0 0.0
  %434 = vmatpush1.msra.mxu0 0.0
  %435 = vmatprep.subr.mxu0 0.0
  %436 = vmatpush1.msra.mxu0 0.0
  %437 = vmatprep.subr.mxu0 0.0
  %438 = vmatpush1.msra.mxu0 0.0
  %439 = vmatprep.subr.mxu0 0.0
  %440 = vmatpush1.msra.mxu0 0.0
  %441 = vmatprep.subr.mxu0 0.0
  %442 = vmatpush1.msra.mxu0 0.0
  %443 = vmatprep.subr.mxu0 0.0
  %444 = vmatpush1.msra.mxu0 0.0
  %445 = vmatprep.subr.mxu0 0.0
  %446 = vmatpush1.msra.mxu0 0.0
  %447 = vmatprep.subr.mxu0 0.0
  %448 = vmatpush1.msra.mxu0 0.0
  %449 = vmatprep.subr.mxu0 0.0
  %450 = vmatpush1.msra.mxu0 0.0
  %451 = vmatprep.mubr.f32.mxu0 0.0
  %452 = vmatmul.mubr.f32.gmra.mrb[0].mxu0 %v385
  %v453 = vpop.f32.mrb[0].mxu0
  %v454 = vadd.f32 0.0, %v453
  %v455 = vpop.f32.mrb[0].mxu0
  %456 = vdwg.mxu0
  %v457 = vadd.f32 %v155, %v454
  %v458 = vxor.u32 %v457, 2147483648
  %v459 = vmul.f32 %v458, 1.442695
  %v460 = vpow.pop %v459
  %v461 = vadd.f32 %v460, 1.0
  %v462 = vrcp.pop %v461
  %v463 = vmul.f32 1.0, %v462
  %v464 = vtanh.pop %v457
  %v465 = vmul.f32 %v463, %v375
  %467 = vrot.lane.b32.xlu0 %v464, 64
  %v468 = vpop.permute.xlu0 %467
  %v470 = vmul.f32 %v463, %v468
  %472 = vrot.lane.b32.xlu0 %v470, 32
  %v473 = vpop.permute.xlu0 %472
  %v475 = vadd.f32 %v465, %v473
  %v476 = vtanh.pop %v475
  %478 = vrot.lane.b32.xlu0 %v476, 64
  %v479 = vpop.permute.xlu0 %478
  %v481 = vmul.f32 %v463, %v479
  %483 = vrot.lane.b32.xlu0 %v481, 32
  %v484 = vpop.permute.xlu0 %483
  %v485 = vsel %vm183, %v484, 0
  %487 = vmatprep.subr.mxu0 0.0
  %488 = vmatpush1.msra.mxu0 %v42
  %489 = vmatprep.subr.mxu0 0.0
  %490 = vmatpush1.msra.mxu0 %v43
  %491 = vmatprep.subr.mxu0 0.0
  %492 = vmatpush1.msra.mxu0 %v44
  %493 = vmatprep.subr.mxu0 0.0
  %494 = vmatpush1.msra.mxu0 %v45
  %495 = vmatprep.subr.mxu0 0.0
  %496 = vmatpush1.msra.mxu0 0.0
  %497 = vmatprep.subr.mxu0 0.0
  %498 = vmatpush1.msra.mxu0 0.0
  %499 = vmatprep.subr.mxu0 0.0
  %500 = vmatpush1.msra.mxu0 0.0
  %501 = vmatprep.subr.mxu0 0.0
  %502 = vmatpush1.msra.mxu0 0.0
  %503 = vmatprep.subr.mxu0 0.0
  %504 = vmatpush1.msra.mxu0 0.0
  %505 = vmatprep.subr.mxu0 0.0
  %506 = vmatpush1.msra.mxu0 0.0
  %507 = vmatprep.subr.mxu0 0.0
  %508 = vmatpush1.msra.mxu0 0.0
  %509 = vmatprep.subr.mxu0 0.0
  %510 = vmatpush1.msra.mxu0 0.0
  %511 = vmatprep.subr.mxu0 0.0
  %512 = vmatpush1.msra.mxu0 0.0
  %513 = vmatprep.subr.mxu0 0.0
  %514 = vmatpush1.msra.mxu0 0.0
  %515 = vmatprep.subr.mxu0 0.0
  %516 = vmatpush1.msra.mxu0 0.0
  %517 = vmatprep.subr.mxu0 0.0
  %518 = vmatpush1.msra.mxu0 0.0
  %519 = vmatprep.subr.mxu0 0.0
  %520 = vmatpush1.msra.mxu0 0.0
  %521 = vmatprep.subr.mxu0 0.0
  %522 = vmatpush1.msra.mxu0 0.0
  %523 = vmatprep.subr.mxu0 0.0
  %524 = vmatpush1.msra.mxu0 0.0
  %525 = vmatprep.subr.mxu0 0.0
  %526 = vmatpush1.msra.mxu0 0.0
  %527 = vmatprep.subr.mxu0 0.0
  %528 = vmatpush1.msra.mxu0 0.0
  %529 = vmatprep.subr.mxu0 0.0
  %530 = vmatpush1.msra.mxu0 0.0
  %531 = vmatprep.subr.mxu0 0.0
  %532 = vmatpush1.msra.mxu0 0.0
  %533 = vmatprep.subr.mxu0 0.0
  %534 = vmatpush1.msra.mxu0 0.0
  %535 = vmatprep.subr.mxu0 0.0
  %536 = vmatpush1.msra.mxu0 0.0
  %537 = vmatprep.subr.mxu0 0.0
  %538 = vmatpush1.msra.mxu0 0.0
  %539 = vmatprep.subr.mxu0 0.0
  %540 = vmatpush1.msra.mxu0 0.0
  %541 = vmatprep.subr.mxu0 0.0
  %542 = vmatpush1.msra.mxu0 0.0
  %543 = vmatprep.subr.mxu0 0.0
  %544 = vmatpush1.msra.mxu0 0.0
  %545 = vmatprep.subr.mxu0 0.0
  %546 = vmatpush1.msra.mxu0 0.0
  %547 = vmatprep.subr.mxu0 0.0
  %548 = vmatpush1.msra.mxu0 0.0
  %549 = vmatprep.subr.mxu0 0.0
  %550 = vmatpush1.msra.mxu0 0.0
  %551 = vmatprep.mubr.f32.mxu0 0.0
  %552 = vmatmul.mubr.f32.gmra.mrb[0].mxu0 %v485
  %v553 = vpop.f32.mrb[0].mxu0
  %v554 = vadd.f32 0.0, %v553
  %v555 = vpop.f32.mrb[0].mxu0
  %556 = vdwg.mxu0
  %v557 = vadd.f32 %v160, %v554
  %v558 = vxor.u32 %v557, 2147483648
  %v559 = vmul.f32 %v558, 1.442695
  %v560 = vpow.pop %v559
  %v561 = vadd.f32 %v560, 1.0
  %v562 = vrcp.pop %v561
  %v563 = vmul.f32 1.0, %v562
  %v564 = vtanh.pop %v557
  %v565 = vmul.f32 %v563, %v475
  %567 = vrot.lane.b32.xlu0 %v564, 64
  %v568 = vpop.permute.xlu0 %567
  %v570 = vmul.f32 %v563, %v568
  %572 = vrot.lane.b32.xlu0 %v570, 32
  %v573 = vpop.permute.xlu0 %572
  %v575 = vadd.f32 %v565, %v573
  %v576 = vtanh.pop %v575
  %578 = vrot.lane.b32.xlu0 %v576, 64
  %v579 = vpop.permute.xlu0 %578
  %v581 = vmul.f32 %v563, %v579
  %583 = vrot.lane.b32.xlu0 %v581, 32
  %v584 = vpop.permute.xlu0 %583
  %v585 = vsel %vm183, %v584, 0
  %587 = vmatprep.subr.mxu0 0.0
  %588 = vmatpush1.msra.mxu0 %v42
  %589 = vmatprep.subr.mxu0 0.0
  %590 = vmatpush1.msra.mxu0 %v43
  %591 = vmatprep.subr.mxu0 0.0
  %592 = vmatpush1.msra.mxu0 %v44
  %593 = vmatprep.subr.mxu0 0.0
  %594 = vmatpush1.msra.mxu0 %v45
  %595 = vmatprep.subr.mxu0 0.0
  %596 = vmatpush1.msra.mxu0 0.0
  %597 = vmatprep.subr.mxu0 0.0
  %598 = vmatpush1.msra.mxu0 0.0
  %599 = vmatprep.subr.mxu0 0.0
  %600 = vmatpush1.msra.mxu0 0.0
  %601 = vmatprep.subr.mxu0 0.0
  %602 = vmatpush1.msra.mxu0 0.0
  %603 = vmatprep.subr.mxu0 0.0
  %604 = vmatpush1.msra.mxu0 0.0
  %605 = vmatprep.subr.mxu0 0.0
  %606 = vmatpush1.msra.mxu0 0.0
  %607 = vmatprep.subr.mxu0 0.0
  %608 = vmatpush1.msra.mxu0 0.0
  %609 = vmatprep.subr.mxu0 0.0
  %610 = vmatpush1.msra.mxu0 0.0
  %611 = vmatprep.subr.mxu0 0.0
  %612 = vmatpush1.msra.mxu0 0.0
  %613 = vmatprep.subr.mxu0 0.0
  %614 = vmatpush1.msra.mxu0 0.0
  %615 = vmatprep.subr.mxu0 0.0
  %616 = vmatpush1.msra.mxu0 0.0
  %617 = vmatprep.subr.mxu0 0.0
  %618 = vmatpush1.msra.mxu0 0.0
  %619 = vmatprep.subr.mxu0 0.0
  %620 = vmatpush1.msra.mxu0 0.0
  %621 = vmatprep.subr.mxu0 0.0
  %622 = vmatpush1.msra.mxu0 0.0
  %623 = vmatprep.subr.mxu0 0.0
  %624 = vmatpush1.msra.mxu0 0.0
  %625 = vmatprep.subr.mxu0 0.0
  %626 = vmatpush1.msra.mxu0 0.0
  %627 = vmatprep.subr.mxu0 0.0
  %628 = vmatpush1.msra.mxu0 0.0
  %629 = vmatprep.subr.mxu0 0.0
  %630 = vmatpush1.msra.mxu0 0.0
  %631 = vmatprep.subr.mxu0 0.0
  %632 = vmatpush1.msra.mxu0 0.0
  %633 = vmatprep.subr.mxu0 0.0
  %634 = vmatpush1.msra.mxu0 0.0
  %635 = vmatprep.subr.mxu0 0.0
  %636 = vmatpush1.msra.mxu0 0.0
  %637 = vmatprep.subr.mxu0 0.0
  %638 = vmatpush1.msra.mxu0 0.0
  %639 = vmatprep.subr.mxu0 0.0
  %640 = vmatpush1.msra.mxu0 0.0
  %641 = vmatprep.subr.mxu0 0.0
  %642 = vmatpush1.msra.mxu0 0.0
  %643 = vmatprep.subr.mxu0 0.0
  %644 = vmatpush1.msra.mxu0 0.0
  %645 = vmatprep.subr.mxu0 0.0
  %646 = vmatpush1.msra.mxu0 0.0
  %647 = vmatprep.subr.mxu0 0.0
  %648 = vmatpush1.msra.mxu0 0.0
  %649 = vmatprep.subr.mxu0 0.0
  %650 = vmatpush1.msra.mxu0 0.0
  %651 = vmatprep.mubr.f32.mxu0 0.0
  %652 = vmatmul.mubr.f32.gmra.mrb[0].mxu0 %v585
  %v653 = vpop.f32.mrb[0].mxu0
  %v654 = vadd.f32 0.0, %v653
  %v655 = vpop.f32.mrb[0].mxu0
  %656 = vdwg.mxu0
  %v657 = vadd.f32 %v165, %v654
  %v658 = vxor.u32 %v657, 2147483648
  %v659 = vmul.f32 %v658, 1.442695
  %v660 = vpow.pop %v659
  %v661 = vadd.f32 %v660, 1.0
  %v662 = vrcp.pop %v661
  %v663 = vmul.f32 1.0, %v662
  %v664 = vtanh.pop %v657
  %v665 = vmul.f32 %v663, %v575
  %667 = vrot.lane.b32.xlu0 %v664, 64
  %v668 = vpop.permute.xlu0 %667
  %v670 = vmul.f32 %v663, %v668
  %672 = vrot.lane.b32.xlu0 %v670, 32
  %v673 = vpop.permute.xlu0 %672
  %v675 = vadd.f32 %v665, %v673
  %v676 = vtanh.pop %v675
  %678 = vrot.lane.b32.xlu0 %v676, 64
  %v679 = vpop.permute.xlu0 %678
  %v681 = vmul.f32 %v663, %v679
  %683 = vrot.lane.b32.xlu0 %v681, 32
  %v684 = vpop.permute.xlu0 %683
  %v685 = vsel %vm183, %v684, 0
  %687 = vmatprep.subr.mxu0 0.0
  %688 = vmatpush1.msra.mxu0 %v42
  %689 = vmatprep.subr.mxu0 0.0
  %690 = vmatpush1.msra.mxu0 %v43
  %691 = vmatprep.subr.mxu0 0.0
  %692 = vmatpush1.msra.mxu0 %v44
  %693 = vmatprep.subr.mxu0 0.0
  %694 = vmatpush1.msra.mxu0 %v45
  %695 = vmatprep.subr.mxu0 0.0
  %696 = vmatpush1.msra.mxu0 0.0
  %697 = vmatprep.subr.mxu0 0.0
  %698 = vmatpush1.msra.mxu0 0.0
  %699 = vmatprep.subr.mxu0 0.0
  %700 = vmatpush1.msra.mxu0 0.0
  %701 = vmatprep.subr.mxu0 0.0
  %702 = vmatpush1.msra.mxu0 0.0
  %703 = vmatprep.subr.mxu0 0.0
  %704 = vmatpush1.msra.mxu0 0.0
  %705 = vmatprep.subr.mxu0 0.0
  %706 = vmatpush1.msra.mxu0 0.0
  %707 = vmatprep.subr.mxu0 0.0
  %708 = vmatpush1.msra.mxu0 0.0
  %709 = vmatprep.subr.mxu0 0.0
  %710 = vmatpush1.msra.mxu0 0.0
  %711 = vmatprep.subr.mxu0 0.0
  %712 = vmatpush1.msra.mxu0 0.0
  %713 = vmatprep.subr.mxu0 0.0
  %714 = vmatpush1.msra.mxu0 0.0
  %715 = vmatprep.subr.mxu0 0.0
  %716 = vmatpush1.msra.mxu0 0.0
  %717 = vmatprep.subr.mxu0 0.0
  %718 = vmatpush1.msra.mxu0 0.0
  %719 = vmatprep.subr.mxu0 0.0
  %720 = vmatpush1.msra.mxu0 0.0
  %721 = vmatprep.subr.mxu0 0.0
  %722 = vmatpush1.msra.mxu0 0.0
  %723 = vmatprep.subr.mxu0 0.0
  %724 = vmatpush1.msra.mxu0 0.0
  %725 = vmatprep.subr.mxu0 0.0
  %726 = vmatpush1.msra.mxu0 0.0
  %727 = vmatprep.subr.mxu0 0.0
  %728 = vmatpush1.msra.mxu0 0.0
  %729 = vmatprep.subr.mxu0 0.0
  %730 = vmatpush1.msra.mxu0 0.0
  %731 = vmatprep.subr.mxu0 0.0
  %732 = vmatpush1.msra.mxu0 0.0
  %733 = vmatprep.subr.mxu0 0.0
  %734 = vmatpush1.msra.mxu0 0.0
  %735 = vmatprep.subr.mxu0 0.0
  %736 = vmatpush1.msra.mxu0 0.0
  %737 = vmatprep.subr.mxu0 0.0
  %738 = vmatpush1.msra.mxu0 0.0
  %739 = vmatprep.subr.mxu0 0.0
  %740 = vmatpush1.msra.mxu0 0.0
  %741 = vmatprep.subr.mxu0 0.0
  %742 = vmatpush1.msra.mxu0 0.0
  %743 = vmatprep.subr.mxu0 0.0
  %744 = vmatpush1.msra.mxu0 0.0
  %745 = vmatprep.subr.mxu0 0.0
  %746 = vmatpush1.msra.mxu0 0.0
  %747 = vmatprep.subr.mxu0 0.0
  %748 = vmatpush1.msra.mxu0 0.0
  %749 = vmatprep.subr.mxu0 0.0
  %750 = vmatpush1.msra.mxu0 0.0
  %751 = vmatprep.mubr.f32.mxu0 0.0
  %752 = vmatmul.mubr.f32.gmra.mrb[0].mxu0 %v685
  %v753 = vpop.f32.mrb[0].mxu0
  %v754 = vadd.f32 0.0, %v753
  %v755 = vpop.f32.mrb[0].mxu0
  %756 = vdwg.mxu0
  %v757 = vadd.f32 %v170, %v754
  %v758 = vxor.u32 %v757, 2147483648
  %v759 = vmul.f32 %v758, 1.442695
  %v760 = vpow.pop %v759
  %v761 = vadd.f32 %v760, 1.0
  %v762 = vrcp.pop %v761
  %v763 = vmul.f32 1.0, %v762
  %v764 = vtanh.pop %v757
  %v765 = vmul.f32 %v763, %v675
  %767 = vrot.lane.b32.xlu0 %v764, 64
  %v768 = vpop.permute.xlu0 %767
  %v770 = vmul.f32 %v763, %v768
  %772 = vrot.lane.b32.xlu0 %v770, 32
  %v773 = vpop.permute.xlu0 %772
  %v775 = vadd.f32 %v765, %v773
  %v776 = vtanh.pop %v775
  %778 = vrot.lane.b32.xlu0 %v776, 64
  %v779 = vpop.permute.xlu0 %778
  %v781 = vmul.f32 %v763, %v779
  %783 = vrot.lane.b32.xlu0 %v781, 32
  %v784 = vpop.permute.xlu0 %783
  %v785 = vsel %vm183, %v784, 0
  %787 = vmatprep.subr.mxu0 0.0
  %788 = vmatpush1.msra.mxu0 %v42
  %789 = vmatprep.subr.mxu0 0.0
  %790 = vmatpush1.msra.mxu0 %v43
  %791 = vmatprep.subr.mxu0 0.0
  %792 = vmatpush1.msra.mxu0 %v44
  %793 = vmatprep.subr.mxu0 0.0
  %794 = vmatpush1.msra.mxu0 %v45
  %795 = vmatprep.subr.mxu0 0.0
  %796 = vmatpush1.msra.mxu0 0.0
  %797 = vmatprep.subr.mxu0 0.0
  %798 = vmatpush1.msra.mxu0 0.0
  %799 = vmatprep.subr.mxu0 0.0
  %800 = vmatpush1.msra.mxu0 0.0
  %801 = vmatprep.subr.mxu0 0.0
  %802 = vmatpush1.msra.mxu0 0.0
  %803 = vmatprep.subr.mxu0 0.0
  %804 = vmatpush1.msra.mxu0 0.0
  %805 = vmatprep.subr.mxu0 0.0
  %806 = vmatpush1.msra.mxu0 0.0
  %807 = vmatprep.subr.mxu0 0.0
  %808 = vmatpush1.msra.mxu0 0.0
  %809 = vmatprep.subr.mxu0 0.0
  %810 = vmatpush1.msra.mxu0 0.0
  %811 = vmatprep.subr.mxu0 0.0
  %812 = vmatpush1.msra.mxu0 0.0
  %813 = vmatprep.subr.mxu0 0.0
  %814 = vmatpush1.msra.mxu0 0.0
  %815 = vmatprep.subr.mxu0 0.0
  %816 = vmatpush1.msra.mxu0 0.0
  %817 = vmatprep.subr.mxu0 0.0
  %818 = vmatpush1.msra.mxu0 0.0
  %819 = vmatprep.subr.mxu0 0.0
  %820 = vmatpush1.msra.mxu0 0.0
  %821 = vmatprep.subr.mxu0 0.0
  %822 = vmatpush1.msra.mxu0 0.0
  %823 = vmatprep.subr.mxu0 0.0
  %824 = vmatpush1.msra.mxu0 0.0
  %825 = vmatprep.subr.mxu0 0.0
  %826 = vmatpush1.msra.mxu0 0.0
  %827 = vmatprep.subr.mxu0 0.0
  %828 = vmatpush1.msra.mxu0 0.0
  %829 = vmatprep.subr.mxu0 0.0
  %830 = vmatpush1.msra.mxu0 0.0
  %831 = vmatprep.subr.mxu0 0.0
  %832 = vmatpush1.msra.mxu0 0.0
  %833 = vmatprep.subr.mxu0 0.0
  %834 = vmatpush1.msra.mxu0 0.0
  %835 = vmatprep.subr.mxu0 0.0
  %836 = vmatpush1.msra.mxu0 0.0
  %837 = vmatprep.subr.mxu0 0.0
  %838 = vmatpush1.msra.mxu0 0.0
  %839 = vmatprep.subr.mxu0 0.0
  %840 = vmatpush1.msra.mxu0 0.0
  %841 = vmatprep.subr.mxu0 0.0
  %842 = vmatpush1.msra.mxu0 0.0
  %843 = vmatprep.subr.mxu0 0.0
  %844 = vmatpush1.msra.mxu0 0.0
  %845 = vmatprep.subr.mxu0 0.0
  %846 = vmatpush1.msra.mxu0 0.0
  %847 = vmatprep.subr.mxu0 0.0
  %848 = vmatpush1.msra.mxu0 0.0
  %849 = vmatprep.subr.mxu0 0.0
  %850 = vmatpush1.msra.mxu0 0.0
  %851 = vmatprep.mubr.f32.mxu0 0.0
  %852 = vmatmul.mubr.f32.gmra.mrb[0].mxu0 %v785
  %v853 = vpop.f32.mrb[0].mxu0
  %v854 = vadd.f32 0.0, %v853
  %v855 = vpop.f32.mrb[0].mxu0
  %856 = vdwg.mxu0
  %v857 = vadd.f32 %v175, %v854
  %v858 = vxor.u32 %v857, 2147483648
  %v859 = vmul.f32 %v858, 1.442695
  %v860 = vpow.pop %v859
  %v861 = vadd.f32 %v860, 1.0
  %v862 = vrcp.pop %v861
  %v863 = vmul.f32 1.0, %v862
  %v864 = vtanh.pop %v857
  %v865 = vmul.f32 %v863, %v775
  %867 = vrot.lane.b32.xlu0 %v864, 64
  %v868 = vpop.permute.xlu0 %867
  %v870 = vmul.f32 %v863, %v868
  %872 = vrot.lane.b32.xlu0 %v870, 32
  %v873 = vpop.permute.xlu0 %872
  %v875 = vadd.f32 %v865, %v873
  %v876 = vtanh.pop %v875
  %878 = vrot.lane.b32.xlu0 %v876, 64
  %v879 = vpop.permute.xlu0 %878
  %v881 = vmul.f32 %v863, %v879
  %883 = vrot.lane.b32.xlu0 %v881, 32
  %v884 = vpop.permute.xlu0 %883
  %v885 = vsel %vm183, %v884, 0
  %887 = vmatprep.subr.mxu0 0.0
  %888 = vmatpush1.msra.mxu0 %v42
  %889 = vmatprep.subr.mxu0 0.0
  %890 = vmatpush1.msra.mxu0 %v43
  %891 = vmatprep.subr.mxu0 0.0
  %892 = vmatpush1.msra.mxu0 %v44
  %893 = vmatprep.subr.mxu0 0.0
  %894 = vmatpush1.msra.mxu0 %v45
  %895 = vmatprep.subr.mxu0 0.0
  %896 = vmatpush1.msra.mxu0 0.0
  %897 = vmatprep.subr.mxu0 0.0
  %898 = vmatpush1.msra.mxu0 0.0
  %899 = vmatprep.subr.mxu0 0.0
  %900 = vmatpush1.msra.mxu0 0.0
  %901 = vmatprep.subr.mxu0 0.0
  %902 = vmatpush1.msra.mxu0 0.0
  %903 = vmatprep.subr.mxu0 0.0
  %904 = vmatpush1.msra.mxu0 0.0
  %905 = vmatprep.subr.mxu0 0.0
  %906 = vmatpush1.msra.mxu0 0.0
  %907 = vmatprep.subr.mxu0 0.0
  %908 = vmatpush1.msra.mxu0 0.0
  %909 = vmatprep.subr.mxu0 0.0
  %910 = vmatpush1.msra.mxu0 0.0
  %911 = vmatprep.subr.mxu0 0.0
  %912 = vmatpush1.msra.mxu0 0.0
  %913 = vmatprep.subr.mxu0 0.0
  %914 = vmatpush1.msra.mxu0 0.0
  %915 = vmatprep.subr.mxu0 0.0
  %916 = vmatpush1.msra.mxu0 0.0
  %917 = vmatprep.subr.mxu0 0.0
  %918 = vmatpush1.msra.mxu0 0.0
  %919 = vmatprep.subr.mxu0 0.0
  %920 = vmatpush1.msra.mxu0 0.0
  %921 = vmatprep.subr.mxu0 0.0
  %922 = vmatpush1.msra.mxu0 0.0
  %923 = vmatprep.subr.mxu0 0.0
  %924 = vmatpush1.msra.mxu0 0.0
  %925 = vmatprep.subr.mxu0 0.0
  %926 = vmatpush1.msra.mxu0 0.0
  %927 = vmatprep.subr.mxu0 0.0
  %928 = vmatpush1.msra.mxu0 0.0
  %929 = vmatprep.subr.mxu0 0.0
  %930 = vmatpush1.msra.mxu0 0.0
  %931 = vmatprep.subr.mxu0 0.0
  %932 = vmatpush1.msra.mxu0 0.0
  %933 = vmatprep.subr.mxu0 0.0
  %934 = vmatpush1.msra.mxu0 0.0
  %935 = vmatprep.subr.mxu0 0.0
  %936 = vmatpush1.msra.mxu0 0.0
  %937 = vmatprep.subr.mxu0 0.0
  %938 = vmatpush1.msra.mxu0 0.0
  %939 = vmatprep.subr.mxu0 0.0
  %940 = vmatpush1.msra.mxu0 0.0
  %941 = vmatprep.subr.mxu0 0.0
  %942 = vmatpush1.msra.mxu0 0.0
  %943 = vmatprep.subr.mxu0 0.0
  %944 = vmatpush1.msra.mxu0 0.0
  %945 = vmatprep.subr.mxu0 0.0
  %946 = vmatpush1.msra.mxu0 0.0
  %947 = vmatprep.subr.mxu0 0.0
  %948 = vmatpush1.msra.mxu0 0.0
  %949 = vmatprep.subr.mxu0 0.0
  %950 = vmatpush1.msra.mxu0 0.0
  %951 = vmatprep.mubr.f32.mxu0 0.0
  %952 = vmatmul.mubr.f32.gmra.mrb[0].mxu0 %v885
  %v953 = vpop.f32.mrb[0].mxu0
  %v954 = vadd.f32 0.0, %v953
  %v955 = vpop.f32.mrb[0].mxu0
  %956 = vdwg.mxu0
  %v957 = vadd.f32 %v180, %v954
  %v958 = vxor.u32 %v957, 2147483648
  %v959 = vmul.f32 %v958, 1.442695
  %v960 = vpow.pop %v959
  %v961 = vadd.f32 %v960, 1.0
  %v962 = vrcp.pop %v961
  %v963 = vmul.f32 1.0, %v962
  %v964 = vtanh.pop %v957
  %v965 = vmul.f32 %v963, %v875
  %967 = vrot.lane.b32.xlu0 %v964, 64
  %v968 = vpop.permute.xlu0 %967
  %v970 = vmul.f32 %v963, %v968
  %972 = vrot.lane.b32.xlu0 %v970, 32
  %v973 = vpop.permute.xlu0 %972
  %v975 = vadd.f32 %v965, %v973
  %v976 = vtanh.pop %v975
  %978 = vrot.lane.b32.xlu0 %v976, 64
  %v979 = vpop.permute.xlu0 %978
  %v981 = vmul.f32 %v963, %v979
  %v982 = vld [vmem:[%s4] sm:$0xff]
  %v983 = vld [vmem:[%s4 + $0x8] sm:$0xff]
  %v984 = vld [vmem:[%s4 + $0x10] sm:$0xff]
  %v985 = vld [vmem:[%s4 + $0x18] sm:$0xff]
  %v986 = vld [vmem:[%s5] sm:$0xff]
  %v987 = vld [vmem:[%s5 + $0x8] sm:$0xff]
  %v988 = vld [vmem:[%s5 + $0x10] sm:$0xff]
  %v989 = vld [vmem:[%s5 + $0x18] sm:$0xff]
  %v990 = vld [vmem:[%s6] sm:$0x1]
  %v992 = vlaneseq
  %v993 = vshrl.u32 %v992, 7
  %v994 = vsub.s32 0, %v993
  %v995 = vrot.slane %v990, %v994
  %998 = vrot.lane.b32.xlu0 %v981, 32
  %v999 = vpop.permute.xlu0 %998
  %v1000 = vsel %vm183, %v999, 0
  %1002 = vmatprep.subr.mxu0 0.0
  %1003 = vmatpush1.msra.mxu0 %v982
  %1004 = vmatprep.subr.mxu0 0.0
  %1005 = vmatpush1.msra.mxu0 %v983
  %1006 = vmatprep.subr.mxu0 0.0
  %1007 = vmatpush1.msra.mxu0 %v984
  %1008 = vmatprep.subr.mxu0 0.0
  %1009 = vmatpush1.msra.mxu0 %v985
  %1010 = vmatprep.subr.mxu0 0.0
  %1011 = vmatpush1.msra.mxu0 0.0
  %1012 = vmatprep.subr.mxu0 0.0
  %1013 = vmatpush1.msra.mxu0 0.0
  %1014 = vmatprep.subr.mxu0 0.0
  %1015 = vmatpush1.msra.mxu0 0.0
  %1016 = vmatprep.subr.mxu0 0.0
  %1017 = vmatpush1.msra.mxu0 0.0
  %1018 = vmatprep.subr.mxu0 0.0
  %1019 = vmatpush1.msra.mxu0 0.0
  %1020 = vmatprep.subr.mxu0 0.0
  %1021 = vmatpush1.msra.mxu0 0.0
  %1022 = vmatprep.subr.mxu0 0.0
  %1023 = vmatpush1.msra.mxu0 0.0
  %1024 = vmatprep.subr.mxu0 0.0
  %1025 = vmatpush1.msra.mxu0 0.0
  %1026 = vmatprep.subr.mxu0 0.0
  %1027 = vmatpush1.msra.mxu0 0.0
  %1028 = vmatprep.subr.mxu0 0.0
  %1029 = vmatpush1.msra.mxu0 0.0
  %1030 = vmatprep.subr.mxu0 0.0
  %1031 = vmatpush1.msra.mxu0 0.0
  %1032 = vmatprep.subr.mxu0 0.0
  %1033 = vmatpush1.msra.mxu0 0.0
  %1034 = vmatprep.subr.mxu0 0.0
  %1035 = vmatpush1.msra.mxu0 0.0
  %1036 = vmatprep.subr.mxu0 0.0
  %1037 = vmatpush1.msra.mxu0 0.0
  %1038 = vmatprep.subr.mxu0 0.0
  %1039 = vmatpush1.msra.mxu0 0.0
  %1040 = vmatprep.subr.mxu0 0.0
  %1041 = vmatpush1.msra.mxu0 0.0
  %1042 = vmatprep.subr.mxu0 0.0
  %1043 = vmatpush1.msra.mxu0 0.0
  %1044 = vmatprep.subr.mxu0 0.0
  %1045 = vmatpush1.msra.mxu0 0.0
  %1046 = vmatprep.subr.mxu0 0.0
  %1047 = vmatpush1.msra.mxu0 0.0
  %1048 = vmatprep.subr.mxu0 0.0
  %1049 = vmatpush1.msra.mxu0 0.0
  %1050 = vmatprep.subr.mxu0 0.0
  %1051 = vmatpush1.msra.mxu0 0.0
  %1052 = vmatprep.subr.mxu0 0.0
  %1053 = vmatpush1.msra.mxu0 0.0
  %1054 = vmatprep.subr.mxu0 0.0
  %1055 = vmatpush1.msra.mxu0 0.0
  %1056 = vmatprep.subr.mxu0 0.0
  %1057 = vmatpush1.msra.mxu0 0.0
  %1058 = vmatprep.subr.mxu0 0.0
  %1059 = vmatpush1.msra.mxu0 0.0
  %1060 = vmatprep.subr.mxu0 0.0
  %1061 = vmatpush1.msra.mxu0 0.0
  %1062 = vmatprep.subr.mxu0 0.0
  %1063 = vmatpush1.msra.mxu0 0.0
  %1064 = vmatprep.subr.mxu0 0.0
  %1065 = vmatpush1.msra.mxu0 0.0
  %1066 = vmatprep.mubr.f32.mxu0 0.0
  %1067 = vmatmul.mubr.f32.gmra.mrb[0].mxu0 %v285
  %v1068 = vpop.f32.mrb[0].mxu0
  %v1069 = vadd.f32 %v995, %v1068
  %v1070 = vpop.f32.mrb[0].mxu0
  %1071 = vmatprep.mubr.f32.mxu0 0.0
  %1072 = vmatmul.mubr.f32.gmra.mrb[0].mxu0 %v385
  %v1073 = vpop.f32.mrb[0].mxu0
  %v1074 = vadd.f32 %v995, %v1073
  %v1075 = vpop.f32.mrb[0].mxu0
  %1076 = vmatprep.mubr.f32.mxu0 0.0
  %1077 = vmatmul.mubr.f32.gmra.mrb[0].mxu0 %v485
  %v1078 = vpop.f32.mrb[0].mxu0
  %v1079 = vadd.f32 %v995, %v1078
  %v1080 = vpop.f32.mrb[0].mxu0
  %1081 = vmatprep.mubr.f32.mxu0 0.0
  %1082 = vmatmul.mubr.f32.gmra.mrb[0].mxu0 %v585
  %v1083 = vpop.f32.mrb[0].mxu0
  %v1084 = vadd.f32 %v995, %v1083
  %v1085 = vpop.f32.mrb[0].mxu0
  %1086 = vmatprep.mubr.f32.mxu0 0.0
  %1087 = vmatmul.mubr.f32.gmra.mrb[0].mxu0 %v685
  %v1088 = vpop.f32.mrb[0].mxu0
  %v1089 = vadd.f32 %v995, %v1088
  %v1090 = vpop.f32.mrb[0].mxu0
  %1091 = vmatprep.mubr.f32.mxu0 0.0
  %1092 = vmatmul.mubr.f32.gmra.mrb[0].mxu0 %v785
  %v1093 = vpop.f32.mrb[0].mxu0
  %v1094 = vadd.f32 %v995, %v1093
  %v1095 = vpop.f32.mrb[0].mxu0
  %1096 = vmatprep.mubr.f32.mxu0 0.0
  %1097 = vmatmul.mubr.f32.gmra.mrb[0].mxu0 %v885
  %v1098 = vpop.f32.mrb[0].mxu0
  %v1099 = vadd.f32 %v995, %v1098
  %v1100 = vpop.f32.mrb[0].mxu0
  %1101 = vmatprep.mubr.f32.mxu0 0.0
  %1102 = vmatmul.mubr.f32.gmra.mrb[0].mxu0 %v1000
  %v1103 = vpop.f32.mrb[0].mxu0
  %v1104 = vadd.f32 %v995, %v1103
  %v1105 = vpop.f32.mrb[0].mxu0
  %1106 = vdwg.mxu0
  %1107 = vmatprep.subr.mxu0 0.0
  %1108 = vmatpush1.msra.mxu0 %v986
  %1109 = vmatprep.subr.mxu0 0.0
  %1110 = vmatpush1.msra.mxu0 %v987
  %1111 = vmatprep.subr.mxu0 0.0
  %1112 = vmatpush1.msra.mxu0 %v988
  %1113 = vmatprep.subr.mxu0 0.0
  %1114 = vmatpush1.msra.mxu0 %v989
  %1115 = vmatprep.subr.mxu0 0.0
  %1116 = vmatpush1.msra.mxu0 0.0
  %1117 = vmatprep.subr.mxu0 0.0
  %1118 = vmatpush1.msra.mxu0 0.0
  %1119 = vmatprep.subr.mxu0 0.0
  %1120 = vmatpush1.msra.mxu0 0.0
  %1121 = vmatprep.subr.mxu0 0.0
  %1122 = vmatpush1.msra.mxu0 0.0
  %1123 = vmatprep.subr.mxu0 0.0
  %1124 = vmatpush1.msra.mxu0 0.0
  %1125 = vmatprep.subr.mxu0 0.0
  %1126 = vmatpush1.msra.mxu0 0.0
  %1127 = vmatprep.subr.mxu0 0.0
  %1128 = vmatpush1.msra.mxu0 0.0
  %1129 = vmatprep.subr.mxu0 0.0
  %1130 = vmatpush1.msra.mxu0 0.0
  %1131 = vmatprep.subr.mxu0 0.0
  %1132 = vmatpush1.msra.mxu0 0.0
  %1133 = vmatprep.subr.mxu0 0.0
  %1134 = vmatpush1.msra.mxu0 0.0
  %1135 = vmatprep.subr.mxu0 0.0
  %1136 = vmatpush1.msra.mxu0 0.0
  %1137 = vmatprep.subr.mxu0 0.0
  %1138 = vmatpush1.msra.mxu0 0.0
  %1139 = vmatprep.subr.mxu0 0.0
  %1140 = vmatpush1.msra.mxu0 0.0
  %1141 = vmatprep.subr.mxu0 0.0
  %1142 = vmatpush1.msra.mxu0 0.0
  %1143 = vmatprep.subr.mxu0 0.0
  %1144 = vmatpush1.msra.mxu0 0.0
  %1145 = vmatprep.subr.mxu0 0.0
  %1146 = vmatpush1.msra.mxu0 0.0
  %1147 = vmatprep.subr.mxu0 0.0
  %1148 = vmatpush1.msra.mxu0 0.0
  %1149 = vmatprep.subr.mxu0 0.0
  %1150 = vmatpush1.msra.mxu0 0.0
  %1151 = vmatprep.subr.mxu0 0.0
  %1152 = vmatpush1.msra.mxu0 0.0
  %1153 = vmatprep.subr.mxu0 0.0
  %1154 = vmatpush1.msra.mxu0 0.0
  %1155 = vmatprep.subr.mxu0 0.0
  %1156 = vmatpush1.msra.mxu0 0.0
  %1157 = vmatprep.subr.mxu0 0.0
  %1158 = vmatpush1.msra.mxu0 0.0
  %1159 = vmatprep.subr.mxu0 0.0
  %1160 = vmatpush1.msra.mxu0 0.0
  %1161 = vmatprep.subr.mxu0 0.0
  %1162 = vmatpush1.msra.mxu0 0.0
  %1163 = vmatprep.subr.mxu0 0.0
  %1164 = vmatpush1.msra.mxu0 0.0
  %1165 = vmatprep.subr.mxu0 0.0
  %1166 = vmatpush1.msra.mxu0 0.0
  %1167 = vmatprep.subr.mxu0 0.0
  %1168 = vmatpush1.msra.mxu0 0.0
  %1169 = vmatprep.subr.mxu0 0.0
  %1170 = vmatpush1.msra.mxu0 0.0
  %1171 = vmatprep.mubr.f32.mxu0 0.0
  %1172 = vmatmul.mubr.f32.gmra.mrb[0].mxu0 %v185
  %v1173 = vpop.f32.mrb[0].mxu0
  %v1174 = vadd.f32 0.0, %v1173
  %v1175 = vpop.f32.mrb[0].mxu0
  %1176 = vdwg.mxu0
  %v1177 = vadd.f32 %v1069, %v1174
  %v1178 = vxor.u32 %v1177, 2147483648
  %v1179 = vmul.f32 %v1178, 1.442695
  %v1180 = vpow.pop %v1179
  %v1181 = vadd.f32 %v1180, 1.0
  %v1182 = vrcp.pop %v1181
  %v1183 = vmul.f32 1.0, %v1182
  %v1184 = vtanh.pop %v1177
  %v1185 = vmul.f32 %v1183, 0.0
  %1187 = vrot.lane.b32.xlu0 %v1184, 64
  %v1188 = vpop.permute.xlu0 %1187
  %v1190 = vmul.f32 %v1183, %v1188
  %1192 = vrot.lane.b32.xlu0 %v1190, 32
  %v1193 = vpop.permute.xlu0 %1192
  %v1195 = vadd.f32 %v1185, %v1193
  %v1196 = vtanh.pop %v1195
  %1198 = vrot.lane.b32.xlu0 %v1196, 64
  %v1199 = vpop.permute.xlu0 %1198
  %v1201 = vmul.f32 %v1183, %v1199
  %1203 = vrot.lane.b32.xlu0 %v1201, 32
  %v1204 = vpop.permute.xlu0 %1203
  %v1205 = vsel %vm183, %v1204, 0
  %1207 = vmatprep.subr.mxu0 0.0
  %1208 = vmatpush1.msra.mxu0 %v986
  %1209 = vmatprep.subr.mxu0 0.0
  %1210 = vmatpush1.msra.mxu0 %v987
  %1211 = vmatprep.subr.mxu0 0.0
  %1212 = vmatpush1.msra.mxu0 %v988
  %1213 = vmatprep.subr.mxu0 0.0
  %1214 = vmatpush1.msra.mxu0 %v989
  %1215 = vmatprep.subr.mxu0 0.0
  %1216 = vmatpush1.msra.mxu0 0.0
  %1217 = vmatprep.subr.mxu0 0.0
  %1218 = vmatpush1.msra.mxu0 0.0
  %1219 = vmatprep.subr.mxu0 0.0
  %1220 = vmatpush1.msra.mxu0 0.0
  %1221 = vmatprep.subr.mxu0 0.0
  %1222 = vmatpush1.msra.mxu0 0.0
  %1223 = vmatprep.subr.mxu0 0.0
  %1224 = vmatpush1.msra.mxu0 0.0
  %1225 = vmatprep.subr.mxu0 0.0
  %1226 = vmatpush1.msra.mxu0 0.0
  %1227 = vmatprep.subr.mxu0 0.0
  %1228 = vmatpush1.msra.mxu0 0.0
  %1229 = vmatprep.subr.mxu0 0.0
  %1230 = vmatpush1.msra.mxu0 0.0
  %1231 = vmatprep.subr.mxu0 0.0
  %1232 = vmatpush1.msra.mxu0 0.0
  %1233 = vmatprep.subr.mxu0 0.0
  %1234 = vmatpush1.msra.mxu0 0.0
  %1235 = vmatprep.subr.mxu0 0.0
  %1236 = vmatpush1.msra.mxu0 0.0
  %1237 = vmatprep.subr.mxu0 0.0
  %1238 = vmatpush1.msra.mxu0 0.0
  %1239 = vmatprep.subr.mxu0 0.0
  %1240 = vmatpush1.msra.mxu0 0.0
  %1241 = vmatprep.subr.mxu0 0.0
  %1242 = vmatpush1.msra.mxu0 0.0
  %1243 = vmatprep.subr.mxu0 0.0
  %1244 = vmatpush1.msra.mxu0 0.0
  %1245 = vmatprep.subr.mxu0 0.0
  %1246 = vmatpush1.msra.mxu0 0.0
  %1247 = vmatprep.subr.mxu0 0.0
  %1248 = vmatpush1.msra.mxu0 0.0
  %1249 = vmatprep.subr.mxu0 0.0
  %1250 = vmatpush1.msra.mxu0 0.0
  %1251 = vmatprep.subr.mxu0 0.0
  %1252 = vmatpush1.msra.mxu0 0.0
  %1253 = vmatprep.subr.mxu0 0.0
  %1254 = vmatpush1.msra.mxu0 0.0
  %1255 = vmatprep.subr.mxu0 0.0
  %1256 = vmatpush1.msra.mxu0 0.0
  %1257 = vmatprep.subr.mxu0 0.0
  %1258 = vmatpush1.msra.mxu0 0.0
  %1259 = vmatprep.subr.mxu0 0.0
  %1260 = vmatpush1.msra.mxu0 0.0
  %1261 = vmatprep.subr.mxu0 0.0
  %1262 = vmatpush1.msra.mxu0 0.0
  %1263 = vmatprep.subr.mxu0 0.0
  %1264 = vmatpush1.msra.mxu0 0.0
  %1265 = vmatprep.subr.mxu0 0.0
  %1266 = vmatpush1.msra.mxu0 0.0
  %1267 = vmatprep.subr.mxu0 0.0
  %1268 = vmatpush1.msra.mxu0 0.0
  %1269 = vmatprep.subr.mxu0 0.0
  %1270 = vmatpush1.msra.mxu0 0.0
  %1271 = vmatprep.mubr.f32.mxu0 0.0
  %1272 = vmatmul.mubr.f32.gmra.mrb[0].mxu0 %v1205
  %v1273 = vpop.f32.mrb[0].mxu0
  %v1274 = vadd.f32 0.0, %v1273
  %v1275 = vpop.f32.mrb[0].mxu0
  %1276 = vdwg.mxu0
  %v1277 = vadd.f32 %v1074, %v1274
  %v1278 = vxor.u32 %v1277, 2147483648
  %v1279 = vmul.f32 %v1278, 1.442695
  %v1280 = vpow.pop %v1279
  %v1281 = vadd.f32 %v1280, 1.0
  %v1282 = vrcp.pop %v1281
  %v1283 = vmul.f32 1.0, %v1282
  %v1284 = vtanh.pop %v1277
  %v1285 = vmul.f32 %v1283, %v1195
  %1287 = vrot.lane.b32.xlu0 %v1284, 64
  %v1288 = vpop.permute.xlu0 %1287
  %v1290 = vmul.f32 %v1283, %v1288
  %1292 = vrot.lane.b32.xlu0 %v1290, 32
  %v1293 = vpop.permute.xlu0 %1292
  %v1295 = vadd.f32 %v1285, %v1293
  %v1296 = vtanh.pop %v1295
  %1298 = vrot.lane.b32.xlu0 %v1296, 64
  %v1299 = vpop.permute.xlu0 %1298
  %v1301 = vmul.f32 %v1283, %v1299
  %1303 = vrot.lane.b32.xlu0 %v1301, 32
  %v1304 = vpop.permute.xlu0 %1303
  %v1305 = vsel %vm183, %v1304, 0
  %1307 = vmatprep.subr.mxu0 0.0
  %1308 = vmatpush1.msra.mxu0 %v986
  %1309 = vmatprep.subr.mxu0 0.0
  %1310 = vmatpush1.msra.mxu0 %v987
  %1311 = vmatprep.subr.mxu0 0.0
  %1312 = vmatpush1.msra.mxu0 %v988
  %1313 = vmatprep.subr.mxu0 0.0
  %1314 = vmatpush1.msra.mxu0 %v989
  %1315 = vmatprep.subr.mxu0 0.0
  %1316 = vmatpush1.msra.mxu0 0.0
  %1317 = vmatprep.subr.mxu0 0.0
  %1318 = vmatpush1.msra.mxu0 0.0
  %1319 = vmatprep.subr.mxu0 0.0
  %1320 = vmatpush1.msra.mxu0 0.0
  %1321 = vmatprep.subr.mxu0 0.0
  %1322 = vmatpush1.msra.mxu0 0.0
  %1323 = vmatprep.subr.mxu0 0.0
  %1324 = vmatpush1.msra.mxu0 0.0
  %1325 = vmatprep.subr.mxu0 0.0
  %1326 = vmatpush1.msra.mxu0 0.0
  %1327 = vmatprep.subr.mxu0 0.0
  %1328 = vmatpush1.msra.mxu0 0.0
  %1329 = vmatprep.subr.mxu0 0.0
  %1330 = vmatpush1.msra.mxu0 0.0
  %1331 = vmatprep.subr.mxu0 0.0
  %1332 = vmatpush1.msra.mxu0 0.0
  %1333 = vmatprep.subr.mxu0 0.0
  %1334 = vmatpush1.msra.mxu0 0.0
  %1335 = vmatprep.subr.mxu0 0.0
  %1336 = vmatpush1.msra.mxu0 0.0
  %1337 = vmatprep.subr.mxu0 0.0
  %1338 = vmatpush1.msra.mxu0 0.0
  %1339 = vmatprep.subr.mxu0 0.0
  %1340 = vmatpush1.msra.mxu0 0.0
  %1341 = vmatprep.subr.mxu0 0.0
  %1342 = vmatpush1.msra.mxu0 0.0
  %1343 = vmatprep.subr.mxu0 0.0
  %1344 = vmatpush1.msra.mxu0 0.0
  %1345 = vmatprep.subr.mxu0 0.0
  %1346 = vmatpush1.msra.mxu0 0.0
  %1347 = vmatprep.subr.mxu0 0.0
  %1348 = vmatpush1.msra.mxu0 0.0
  %1349 = vmatprep.subr.mxu0 0.0
  %1350 = vmatpush1.msra.mxu0 0.0
  %1351 = vmatprep.subr.mxu0 0.0
  %1352 = vmatpush1.msra.mxu0 0.0
  %1353 = vmatprep.subr.mxu0 0.0
  %1354 = vmatpush1.msra.mxu0 0.0
  %1355 = vmatprep.subr.mxu0 0.0
  %1356 = vmatpush1.msra.mxu0 0.0
  %1357 = vmatprep.subr.mxu0 0.0
  %1358 = vmatpush1.msra.mxu0 0.0
  %1359 = vmatprep.subr.mxu0 0.0
  %1360 = vmatpush1.msra.mxu0 0.0
  %1361 = vmatprep.subr.mxu0 0.0
  %1362 = vmatpush1.msra.mxu0 0.0
  %1363 = vmatprep.subr.mxu0 0.0
  %1364 = vmatpush1.msra.mxu0 0.0
  %1365 = vmatprep.subr.mxu0 0.0
  %1366 = vmatpush1.msra.mxu0 0.0
  %1367 = vmatprep.subr.mxu0 0.0
  %1368 = vmatpush1.msra.mxu0 0.0
  %1369 = vmatprep.subr.mxu0 0.0
  %1370 = vmatpush1.msra.mxu0 0.0
  %1371 = vmatprep.mubr.f32.mxu0 0.0
  %1372 = vmatmul.mubr.f32.gmra.mrb[0].mxu0 %v1305
  %v1373 = vpop.f32.mrb[0].mxu0
  %v1374 = vadd.f32 0.0, %v1373
  %v1375 = vpop.f32.mrb[0].mxu0
  %1376 = vdwg.mxu0
  %v1377 = vadd.f32 %v1079, %v1374
  %v1378 = vxor.u32 %v1377, 2147483648
  %v1379 = vmul.f32 %v1378, 1.442695
  %v1380 = vpow.pop %v1379
  %v1381 = vadd.f32 %v1380, 1.0
  %v1382 = vrcp.pop %v1381
  %v1383 = vmul.f32 1.0, %v1382
  %v1384 = vtanh.pop %v1377
  %v1385 = vmul.f32 %v1383, %v1295
  %1387 = vrot.lane.b32.xlu0 %v1384, 64
  %v1388 = vpop.permute.xlu0 %1387
  %v1390 = vmul.f32 %v1383, %v1388
  %1392 = vrot.lane.b32.xlu0 %v1390, 32
  %v1393 = vpop.permute.xlu0 %1392
  %v1395 = vadd.f32 %v1385, %v1393
  %v1396 = vtanh.pop %v1395
  %1398 = vrot.lane.b32.xlu0 %v1396, 64
  %v1399 = vpop.permute.xlu0 %1398
  %v1401 = vmul.f32 %v1383, %v1399
  %1403 = vrot.lane.b32.xlu0 %v1401, 32
  %v1404 = vpop.permute.xlu0 %1403
  %v1405 = vsel %vm183, %v1404, 0
  %1407 = vmatprep.subr.mxu0 0.0
  %1408 = vmatpush1.msra.mxu0 %v986
  %1409 = vmatprep.subr.mxu0 0.0
  %1410 = vmatpush1.msra.mxu0 %v987
  %1411 = vmatprep.subr.mxu0 0.0
  %1412 = vmatpush1.msra.mxu0 %v988
  %1413 = vmatprep.subr.mxu0 0.0
  %1414 = vmatpush1.msra.mxu0 %v989
  %1415 = vmatprep.subr.mxu0 0.0
  %1416 = vmatpush1.msra.mxu0 0.0
  %1417 = vmatprep.subr.mxu0 0.0
  %1418 = vmatpush1.msra.mxu0 0.0
  %1419 = vmatprep.subr.mxu0 0.0
  %1420 = vmatpush1.msra.mxu0 0.0
  %1421 = vmatprep.subr.mxu0 0.0
  %1422 = vmatpush1.msra.mxu0 0.0
  %1423 = vmatprep.subr.mxu0 0.0
  %1424 = vmatpush1.msra.mxu0 0.0
  %1425 = vmatprep.subr.mxu0 0.0
  %1426 = vmatpush1.msra.mxu0 0.0
  %1427 = vmatprep.subr.mxu0 0.0
  %1428 = vmatpush1.msra.mxu0 0.0
  %1429 = vmatprep.subr.mxu0 0.0
  %1430 = vmatpush1.msra.mxu0 0.0
  %1431 = vmatprep.subr.mxu0 0.0
  %1432 = vmatpush1.msra.mxu0 0.0
  %1433 = vmatprep.subr.mxu0 0.0
  %1434 = vmatpush1.msra.mxu0 0.0
  %1435 = vmatprep.subr.mxu0 0.0
  %1436 = vmatpush1.msra.mxu0 0.0
  %1437 = vmatprep.subr.mxu0 0.0
  %1438 = vmatpush1.msra.mxu0 0.0
  %1439 = vmatprep.subr.mxu0 0.0
  %1440 = vmatpush1.msra.mxu0 0.0
  %1441 = vmatprep.subr.mxu0 0.0
  %1442 = vmatpush1.msra.mxu0 0.0
  %1443 = vmatprep.subr.mxu0 0.0
  %1444 = vmatpush1.msra.mxu0 0.0
  %1445 = vmatprep.subr.mxu0 0.0
  %1446 = vmatpush1.msra.mxu0 0.0
  %1447 = vmatprep.subr.mxu0 0.0
  %1448 = vmatpush1.msra.mxu0 0.0
  %1449 = vmatprep.subr.mxu0 0.0
  %1450 = vmatpush1.msra.mxu0 0.0
  %1451 = vmatprep.subr.mxu0 0.0
  %1452 = vmatpush1.msra.mxu0 0.0
  %1453 = vmatprep.subr.mxu0 0.0
  %1454 = vmatpush1.msra.mxu0 0.0
  %1455 = vmatprep.subr.mxu0 0.0
  %1456 = vmatpush1.msra.mxu0 0.0
  %1457 = vmatprep.subr.mxu0 0.0
  %1458 = vmatpush1.msra.mxu0 0.0
  %1459 = vmatprep.subr.mxu0 0.0
  %1460 = vmatpush1.msra.mxu0 0.0
  %1461 = vmatprep.subr.mxu0 0.0
  %1462 = vmatpush1.msra.mxu0 0.0
  %1463 = vmatprep.subr.mxu0 0.0
  %1464 = vmatpush1.msra.mxu0 0.0
  %1465 = vmatprep.subr.mxu0 0.0
  %1466 = vmatpush1.msra.mxu0 0.0
  %1467 = vmatprep.subr.mxu0 0.0
  %1468 = vmatpush1.msra.mxu0 0.0
  %1469 = vmatprep.subr.mxu0 0.0
  %1470 = vmatpush1.msra.mxu0 0.0
  %1471 = vmatprep.mubr.f32.mxu0 0.0
  %1472 = vmatmul.mubr.f32.gmra.mrb[0].mxu0 %v1405
  %v1473 = vpop.f32.mrb[0].mxu0
  %v1474 = vadd.f32 0.0, %v1473
  %v1475 = vpop.f32.mrb[0].mxu0
  %1476 = vdwg.mxu0
  %v1477 = vadd.f32 %v1084, %v1474
  %v1478 = vxor.u32 %v1477, 2147483648
  %v1479 = vmul.f32 %v1478, 1.442695
  %v1480 = vpow.pop %v1479
  %v1481 = vadd.f32 %v1480, 1.0
  %v1482 = vrcp.pop %v1481
  %v1483 = vmul.f32 1.0, %v1482
  %v1484 = vtanh.pop %v1477
  %v1485 = vmul.f32 %v1483, %v1395
  %1487 = vrot.lane.b32.xlu0 %v1484, 64
  %v1488 = vpop.permute.xlu0 %1487
  %v1490 = vmul.f32 %v1483, %v1488
  %1492 = vrot.lane.b32.xlu0 %v1490, 32
  %v1493 = vpop.permute.xlu0 %1492
  %v1495 = vadd.f32 %v1485, %v1493
  %v1496 = vtanh.pop %v1495
  %1498 = vrot.lane.b32.xlu0 %v1496, 64
  %v1499 = vpop.permute.xlu0 %1498
  %v1501 = vmul.f32 %v1483, %v1499
  %1503 = vrot.lane.b32.xlu0 %v1501, 32
  %v1504 = vpop.permute.xlu0 %1503
  %v1505 = vsel %vm183, %v1504, 0
  %1507 = vmatprep.subr.mxu0 0.0
  %1508 = vmatpush1.msra.mxu0 %v986
  %1509 = vmatprep.subr.mxu0 0.0
  %1510 = vmatpush1.msra.mxu0 %v987
  %1511 = vmatprep.subr.mxu0 0.0
  %1512 = vmatpush1.msra.mxu0 %v988
  %1513 = vmatprep.subr.mxu0 0.0
  %1514 = vmatpush1.msra.mxu0 %v989
  %1515 = vmatprep.subr.mxu0 0.0
  %1516 = vmatpush1.msra.mxu0 0.0
  %1517 = vmatprep.subr.mxu0 0.0
  %1518 = vmatpush1.msra.mxu0 0.0
  %1519 = vmatprep.subr.mxu0 0.0
  %1520 = vmatpush1.msra.mxu0 0.0
  %1521 = vmatprep.subr.mxu0 0.0
  %1522 = vmatpush1.msra.mxu0 0.0
  %1523 = vmatprep.subr.mxu0 0.0
  %1524 = vmatpush1.msra.mxu0 0.0
  %1525 = vmatprep.subr.mxu0 0.0
  %1526 = vmatpush1.msra.mxu0 0.0
  %1527 = vmatprep.subr.mxu0 0.0
  %1528 = vmatpush1.msra.mxu0 0.0
  %1529 = vmatprep.subr.mxu0 0.0
  %1530 = vmatpush1.msra.mxu0 0.0
  %1531 = vmatprep.subr.mxu0 0.0
  %1532 = vmatpush1.msra.mxu0 0.0
  %1533 = vmatprep.subr.mxu0 0.0
  %1534 = vmatpush1.msra.mxu0 0.0
  %1535 = vmatprep.subr.mxu0 0.0
  %1536 = vmatpush1.msra.mxu0 0.0
  %1537 = vmatprep.subr.mxu0 0.0
  %1538 = vmatpush1.msra.mxu0 0.0
  %1539 = vmatprep.subr.mxu0 0.0
  %1540 = vmatpush1.msra.mxu0 0.0
  %1541 = vmatprep.subr.mxu0 0.0
  %1542 = vmatpush1.msra.mxu0 0.0
  %1543 = vmatprep.subr.mxu0 0.0
  %1544 = vmatpush1.msra.mxu0 0.0
  %1545 = vmatprep.subr.mxu0 0.0
  %1546 = vmatpush1.msra.mxu0 0.0
  %1547 = vmatprep.subr.mxu0 0.0
  %1548 = vmatpush1.msra.mxu0 0.0
  %1549 = vmatprep.subr.mxu0 0.0
  %1550 = vmatpush1.msra.mxu0 0.0
  %1551 = vmatprep.subr.mxu0 0.0
  %1552 = vmatpush1.msra.mxu0 0.0
  %1553 = vmatprep.subr.mxu0 0.0
  %1554 = vmatpush1.msra.mxu0 0.0
  %1555 = vmatprep.subr.mxu0 0.0
  %1556 = vmatpush1.msra.mxu0 0.0
  %1557 = vmatprep.subr.mxu0 0.0
  %1558 = vmatpush1.msra.mxu0 0.0
  %1559 = vmatprep.subr.mxu0 0.0
  %1560 = vmatpush1.msra.mxu0 0.0
  %1561 = vmatprep.subr.mxu0 0.0
  %1562 = vmatpush1.msra.mxu0 0.0
  %1563 = vmatprep.subr.mxu0 0.0
  %1564 = vmatpush1.msra.mxu0 0.0
  %1565 = vmatprep.subr.mxu0 0.0
  %1566 = vmatpush1.msra.mxu0 0.0
  %1567 = vmatprep.subr.mxu0 0.0
  %1568 = vmatpush1.msra.mxu0 0.0
  %1569 = vmatprep.subr.mxu0 0.0
  %1570 = vmatpush1.msra.mxu0 0.0
  %1571 = vmatprep.mubr.f32.mxu0 0.0
  %1572 = vmatmul.mubr.f32.gmra.mrb[0].mxu0 %v1505
  %v1573 = vpop.f32.mrb[0].mxu0
  %v1574 = vadd.f32 0.0, %v1573
  %v1575 = vpop.f32.mrb[0].mxu0
  %1576 = vdwg.mxu0
  %v1577 = vadd.f32 %v1089, %v1574
  %v1578 = vxor.u32 %v1577, 2147483648
  %v1579 = vmul.f32 %v1578, 1.442695
  %v1580 = vpow.pop %v1579
  %v1581 = vadd.f32 %v1580, 1.0
  %v1582 = vrcp.pop %v1581
  %v1583 = vmul.f32 1.0, %v1582
  %v1584 = vtanh.pop %v1577
  %v1585 = vmul.f32 %v1583, %v1495
  %1587 = vrot.lane.b32.xlu0 %v1584, 64
  %v1588 = vpop.permute.xlu0 %1587
  %v1590 = vmul.f32 %v1583, %v1588
  %1592 = vrot.lane.b32.xlu0 %v1590, 32
  %v1593 = vpop.permute.xlu0 %1592
  %v1595 = vadd.f32 %v1585, %v1593
  %v1596 = vtanh.pop %v1595
  %1598 = vrot.lane.b32.xlu0 %v1596, 64
  %v1599 = vpop.permute.xlu0 %1598
  %v1601 = vmul.f32 %v1583, %v1599
  %1603 = vrot.lane.b32.xlu0 %v1601, 32
  %v1604 = vpop.permute.xlu0 %1603
  %v1605 = vsel %vm183, %v1604, 0
  %1607 = vmatprep.subr.mxu0 0.0
  %1608 = vmatpush1.msra.mxu0 %v986
  %1609 = vmatprep.subr.mxu0 0.0
  %1610 = vmatpush1.msra.mxu0 %v987
  %1611 = vmatprep.subr.mxu0 0.0
  %1612 = vmatpush1.msra.mxu0 %v988
  %1613 = vmatprep.subr.mxu0 0.0
  %1614 = vmatpush1.msra.mxu0 %v989
  %1615 = vmatprep.subr.mxu0 0.0
  %1616 = vmatpush1.msra.mxu0 0.0
  %1617 = vmatprep.subr.mxu0 0.0
  %1618 = vmatpush1.msra.mxu0 0.0
  %1619 = vmatprep.subr.mxu0 0.0
  %1620 = vmatpush1.msra.mxu0 0.0
  %1621 = vmatprep.subr.mxu0 0.0
  %1622 = vmatpush1.msra.mxu0 0.0
  %1623 = vmatprep.subr.mxu0 0.0
  %1624 = vmatpush1.msra.mxu0 0.0
  %1625 = vmatprep.subr.mxu0 0.0
  %1626 = vmatpush1.msra.mxu0 0.0
  %1627 = vmatprep.subr.mxu0 0.0
  %1628 = vmatpush1.msra.mxu0 0.0
  %1629 = vmatprep.subr.mxu0 0.0
  %1630 = vmatpush1.msra.mxu0 0.0
  %1631 = vmatprep.subr.mxu0 0.0
  %1632 = vmatpush1.msra.mxu0 0.0
  %1633 = vmatprep.subr.mxu0 0.0
  %1634 = vmatpush1.msra.mxu0 0.0
  %1635 = vmatprep.subr.mxu0 0.0
  %1636 = vmatpush1.msra.mxu0 0.0
  %1637 = vmatprep.subr.mxu0 0.0
  %1638 = vmatpush1.msra.mxu0 0.0
  %1639 = vmatprep.subr.mxu0 0.0
  %1640 = vmatpush1.msra.mxu0 0.0
  %1641 = vmatprep.subr.mxu0 0.0
  %1642 = vmatpush1.msra.mxu0 0.0
  %1643 = vmatprep.subr.mxu0 0.0
  %1644 = vmatpush1.msra.mxu0 0.0
  %1645 = vmatprep.subr.mxu0 0.0
  %1646 = vmatpush1.msra.mxu0 0.0
  %1647 = vmatprep.subr.mxu0 0.0
  %1648 = vmatpush1.msra.mxu0 0.0
  %1649 = vmatprep.subr.mxu0 0.0
  %1650 = vmatpush1.msra.mxu0 0.0
  %1651 = vmatprep.subr.mxu0 0.0
  %1652 = vmatpush1.msra.mxu0 0.0
  %1653 = vmatprep.subr.mxu0 0.0
  %1654 = vmatpush1.msra.mxu0 0.0
  %1655 = vmatprep.subr.mxu0 0.0
  %1656 = vmatpush1.msra.mxu0 0.0
  %1657 = vmatprep.subr.mxu0 0.0
  %1658 = vmatpush1.msra.mxu0 0.0
  %1659 = vmatprep.subr.mxu0 0.0
  %1660 = vmatpush1.msra.mxu0 0.0
  %1661 = vmatprep.subr.mxu0 0.0
  %1662 = vmatpush1.msra.mxu0 0.0
  %1663 = vmatprep.subr.mxu0 0.0
  %1664 = vmatpush1.msra.mxu0 0.0
  %1665 = vmatprep.subr.mxu0 0.0
  %1666 = vmatpush1.msra.mxu0 0.0
  %1667 = vmatprep.subr.mxu0 0.0
  %1668 = vmatpush1.msra.mxu0 0.0
  %1669 = vmatprep.subr.mxu0 0.0
  %1670 = vmatpush1.msra.mxu0 0.0
  %1671 = vmatprep.mubr.f32.mxu0 0.0
  %1672 = vmatmul.mubr.f32.gmra.mrb[0].mxu0 %v1605
  %v1673 = vpop.f32.mrb[0].mxu0
  %v1674 = vadd.f32 0.0, %v1673
  %v1675 = vpop.f32.mrb[0].mxu0
  %1676 = vdwg.mxu0
  %v1677 = vadd.f32 %v1094, %v1674
  %v1678 = vxor.u32 %v1677, 2147483648
  %v1679 = vmul.f32 %v1678, 1.442695
  %v1680 = vpow.pop %v1679
  %v1681 = vadd.f32 %v1680, 1.0
  %v1682 = vrcp.pop %v1681
  %v1683 = vmul.f32 1.0, %v1682
  %v1684 = vtanh.pop %v1677
  %v1685 = vmul.f32 %v1683, %v1595
  %1687 = vrot.lane.b32.xlu0 %v1684, 64
  %v1688 = vpop.permute.xlu0 %1687
  %v1690 = vmul.f32 %v1683, %v1688
  %1692 = vrot.lane.b32.xlu0 %v1690, 32
  %v1693 = vpop.permute.xlu0 %1692
  %v1695 = vadd.f32 %v1685, %v1693
  %v1696 = vtanh.pop %v1695
  %1698 = vrot.lane.b32.xlu0 %v1696, 64
  %v1699 = vpop.permute.xlu0 %1698
  %v1701 = vmul.f32 %v1683, %v1699
  %1703 = vrot.lane.b32.xlu0 %v1701, 32
  %v1704 = vpop.permute.xlu0 %1703
  %v1705 = vsel %vm183, %v1704, 0
  %1707 = vmatprep.subr.mxu0 0.0
  %1708 = vmatpush1.msra.mxu0 %v986
  %1709 = vmatprep.subr.mxu0 0.0
  %1710 = vmatpush1.msra.mxu0 %v987
  %1711 = vmatprep.subr.mxu0 0.0
  %1712 = vmatpush1.msra.mxu0 %v988
  %1713 = vmatprep.subr.mxu0 0.0
  %1714 = vmatpush1.msra.mxu0 %v989
  %1715 = vmatprep.subr.mxu0 0.0
  %1716 = vmatpush1.msra.mxu0 0.0
  %1717 = vmatprep.subr.mxu0 0.0
  %1718 = vmatpush1.msra.mxu0 0.0
  %1719 = vmatprep.subr.mxu0 0.0
  %1720 = vmatpush1.msra.mxu0 0.0
  %1721 = vmatprep.subr.mxu0 0.0
  %1722 = vmatpush1.msra.mxu0 0.0
  %1723 = vmatprep.subr.mxu0 0.0
  %1724 = vmatpush1.msra.mxu0 0.0
  %1725 = vmatprep.subr.mxu0 0.0
  %1726 = vmatpush1.msra.mxu0 0.0
  %1727 = vmatprep.subr.mxu0 0.0
  %1728 = vmatpush1.msra.mxu0 0.0
  %1729 = vmatprep.subr.mxu0 0.0
  %1730 = vmatpush1.msra.mxu0 0.0
  %1731 = vmatprep.subr.mxu0 0.0
  %1732 = vmatpush1.msra.mxu0 0.0
  %1733 = vmatprep.subr.mxu0 0.0
  %1734 = vmatpush1.msra.mxu0 0.0
  %1735 = vmatprep.subr.mxu0 0.0
  %1736 = vmatpush1.msra.mxu0 0.0
  %1737 = vmatprep.subr.mxu0 0.0
  %1738 = vmatpush1.msra.mxu0 0.0
  %1739 = vmatprep.subr.mxu0 0.0
  %1740 = vmatpush1.msra.mxu0 0.0
  %1741 = vmatprep.subr.mxu0 0.0
  %1742 = vmatpush1.msra.mxu0 0.0
  %1743 = vmatprep.subr.mxu0 0.0
  %1744 = vmatpush1.msra.mxu0 0.0
  %1745 = vmatprep.subr.mxu0 0.0
  %1746 = vmatpush1.msra.mxu0 0.0
  %1747 = vmatprep.subr.mxu0 0.0
  %1748 = vmatpush1.msra.mxu0 0.0
  %1749 = vmatprep.subr.mxu0 0.0
  %1750 = vmatpush1.msra.mxu0 0.0
  %1751 = vmatprep.subr.mxu0 0.0
  %1752 = vmatpush1.msra.mxu0 0.0
  %1753 = vmatprep.subr.mxu0 0.0
  %1754 = vmatpush1.msra.mxu0 0.0
  %1755 = vmatprep.subr.mxu0 0.0
  %1756 = vmatpush1.msra.mxu0 0.0
  %1757 = vmatprep.subr.mxu0 0.0
  %1758 = vmatpush1.msra.mxu0 0.0
  %1759 = vmatprep.subr.mxu0 0.0
  %1760 = vmatpush1.msra.mxu0 0.0
  %1761 = vmatprep.subr.mxu0 0.0
  %1762 = vmatpush1.msra.mxu0 0.0
  %1763 = vmatprep.subr.mxu0 0.0
  %1764 = vmatpush1.msra.mxu0 0.0
  %1765 = vmatprep.subr.mxu0 0.0
  %1766 = vmatpush1.msra.mxu0 0.0
  %1767 = vmatprep.subr.mxu0 0.0
  %1768 = vmatpush1.msra.mxu0 0.0
  %1769 = vmatprep.subr.mxu0 0.0
  %1770 = vmatpush1.msra.mxu0 0.0
  %1771 = vmatprep.mubr.f32.mxu0 0.0
  %1772 = vmatmul.mubr.f32.gmra.mrb[0].mxu0 %v1705
  %v1773 = vpop.f32.mrb[0].mxu0
  %v1774 = vadd.f32 0.0, %v1773
  %v1775 = vpop.f32.mrb[0].mxu0
  %1776 = vdwg.mxu0
  %v1777 = vadd.f32 %v1099, %v1774
  %v1778 = vxor.u32 %v1777, 2147483648
  %v1779 = vmul.f32 %v1778, 1.442695
  %v1780 = vpow.pop %v1779
  %v1781 = vadd.f32 %v1780, 1.0
  %v1782 = vrcp.pop %v1781
  %v1783 = vmul.f32 1.0, %v1782
  %v1784 = vtanh.pop %v1777
  %v1785 = vmul.f32 %v1783, %v1695
  %1787 = vrot.lane.b32.xlu0 %v1784, 64
  %v1788 = vpop.permute.xlu0 %1787
  %v1790 = vmul.f32 %v1783, %v1788
  %1792 = vrot.lane.b32.xlu0 %v1790, 32
  %v1793 = vpop.permute.xlu0 %1792
  %v1795 = vadd.f32 %v1785, %v1793
  %v1796 = vtanh.pop %v1795
  %1798 = vrot.lane.b32.xlu0 %v1796, 64
  %v1799 = vpop.permute.xlu0 %1798
  %v1801 = vmul.f32 %v1783, %v1799
  %1803 = vrot.lane.b32.xlu0 %v1801, 32
  %v1804 = vpop.permute.xlu0 %1803
  %v1805 = vsel %vm183, %v1804, 0
  %1807 = vmatprep.subr.mxu0 0.0
  %1808 = vmatpush1.msra.mxu0 %v986
  %1809 = vmatprep.subr.mxu0 0.0
  %1810 = vmatpush1.msra.mxu0 %v987
  %1811 = vmatprep.subr.mxu0 0.0
  %1812 = vmatpush1.msra.mxu0 %v988
  %1813 = vmatprep.subr.mxu0 0.0
  %1814 = vmatpush1.msra.mxu0 %v989
  %1815 = vmatprep.subr.mxu0 0.0
  %1816 = vmatpush1.msra.mxu0 0.0
  %1817 = vmatprep.subr.mxu0 0.0
  %1818 = vmatpush1.msra.mxu0 0.0
  %1819 = vmatprep.subr.mxu0 0.0
  %1820 = vmatpush1.msra.mxu0 0.0
  %1821 = vmatprep.subr.mxu0 0.0
  %1822 = vmatpush1.msra.mxu0 0.0
  %1823 = vmatprep.subr.mxu0 0.0
  %1824 = vmatpush1.msra.mxu0 0.0
  %1825 = vmatprep.subr.mxu0 0.0
  %1826 = vmatpush1.msra.mxu0 0.0
  %1827 = vmatprep.subr.mxu0 0.0
  %1828 = vmatpush1.msra.mxu0 0.0
  %1829 = vmatprep.subr.mxu0 0.0
  %1830 = vmatpush1.msra.mxu0 0.0
  %1831 = vmatprep.subr.mxu0 0.0
  %1832 = vmatpush1.msra.mxu0 0.0
  %1833 = vmatprep.subr.mxu0 0.0
  %1834 = vmatpush1.msra.mxu0 0.0
  %1835 = vmatprep.subr.mxu0 0.0
  %1836 = vmatpush1.msra.mxu0 0.0
  %1837 = vmatprep.subr.mxu0 0.0
  %1838 = vmatpush1.msra.mxu0 0.0
  %1839 = vmatprep.subr.mxu0 0.0
  %1840 = vmatpush1.msra.mxu0 0.0
  %1841 = vmatprep.subr.mxu0 0.0
  %1842 = vmatpush1.msra.mxu0 0.0
  %1843 = vmatprep.subr.mxu0 0.0
  %1844 = vmatpush1.msra.mxu0 0.0
  %1845 = vmatprep.subr.mxu0 0.0
  %1846 = vmatpush1.msra.mxu0 0.0
  %1847 = vmatprep.subr.mxu0 0.0
  %1848 = vmatpush1.msra.mxu0 0.0
  %1849 = vmatprep.subr.mxu0 0.0
  %1850 = vmatpush1.msra.mxu0 0.0
  %1851 = vmatprep.subr.mxu0 0.0
  %1852 = vmatpush1.msra.mxu0 0.0
  %1853 = vmatprep.subr.mxu0 0.0
  %1854 = vmatpush1.msra.mxu0 0.0
  %1855 = vmatprep.subr.mxu0 0.0
  %1856 = vmatpush1.msra.mxu0 0.0
  %1857 = vmatprep.subr.mxu0 0.0
  %1858 = vmatpush1.msra.mxu0 0.0
  %1859 = vmatprep.subr.mxu0 0.0
  %1860 = vmatpush1.msra.mxu0 0.0
  %1861 = vmatprep.subr.mxu0 0.0
  %1862 = vmatpush1.msra.mxu0 0.0
  %1863 = vmatprep.subr.mxu0 0.0
  %1864 = vmatpush1.msra.mxu0 0.0
  %1865 = vmatprep.subr.mxu0 0.0
  %1866 = vmatpush1.msra.mxu0 0.0
  %1867 = vmatprep.subr.mxu0 0.0
  %1868 = vmatpush1.msra.mxu0 0.0
  %1869 = vmatprep.subr.mxu0 0.0
  %1870 = vmatpush1.msra.mxu0 0.0
  %1871 = vmatprep.mubr.f32.mxu0 0.0
  %1872 = vmatmul.mubr.f32.gmra.mrb[0].mxu0 %v1805
  %v1873 = vpop.f32.mrb[0].mxu0
  %v1874 = vadd.f32 0.0, %v1873
  %v1875 = vpop.f32.mrb[0].mxu0
  %1876 = vdwg.mxu0
  %v1877 = vadd.f32 %v1104, %v1874
  %v1878 = vxor.u32 %v1877, 2147483648
  %v1879 = vmul.f32 %v1878, 1.442695
  %v1880 = vpow.pop %v1879
  %v1881 = vadd.f32 %v1880, 1.0
  %v1882 = vrcp.pop %v1881
  %v1883 = vmul.f32 1.0, %v1882
  %v1884 = vtanh.pop %v1877
  %v1885 = vmul.f32 %v1883, %v1795
  %1887 = vrot.lane.b32.xlu0 %v1884, 64
  %v1888 = vpop.permute.xlu0 %1887
  %v1890 = vmul.f32 %v1883, %v1888
  %1892 = vrot.lane.b32.xlu0 %v1890, 32
  %v1893 = vpop.permute.xlu0 %1892
  %v1895 = vadd.f32 %v1885, %v1893
  %v1896 = vtanh.pop %v1895
  %1898 = vrot.lane.b32.xlu0 %v1896, 64
  %v1899 = vpop.permute.xlu0 %1898
  %v1901 = vmul.f32 %v1883, %v1899
  %v1902 = vld [vmem:[%s7] sm:$0xff]
  %v1903 = vld [vmem:[%s7 + $0x8] sm:$0xff]
  %v1904 = vld [vmem:[%s7 + $0x10] sm:$0xff]
  %v1905 = vld [vmem:[%s7 + $0x18] sm:$0xff]
  %v1906 = vld [vmem:[%s8] sm:$0x1]
  %v1908 = vlaneseq
  %v1909 = vshrl.u32 %v1908, 7
  %v1910 = vsub.s32 0, %v1909
  %v1911 = vrot.slane %v1906, %v1910
  %1914 = vrot.lane.b32.xlu0 %v1901, 32
  %v1915 = vpop.permute.xlu0 %1914
  %v1916 = vsel %vm183, %v1915, 0
  %1918 = vmatprep.subr.mxu0 0.0
  %1919 = vmatpush1.msra.mxu0 %v1902
  %1920 = vmatprep.subr.mxu0 0.0
  %1921 = vmatpush1.msra.mxu0 %v1903
  %1922 = vmatprep.subr.mxu0 0.0
  %1923 = vmatpush1.msra.mxu0 %v1904
  %1924 = vmatprep.subr.mxu0 0.0
  %1925 = vmatpush1.msra.mxu0 %v1905
  %1926 = vmatprep.subr.mxu0 0.0
  %1927 = vmatpush1.msra.mxu0 0.0
  %1928 = vmatprep.subr.mxu0 0.0
  %1929 = vmatpush1.msra.mxu0 0.0
  %1930 = vmatprep.subr.mxu0 0.0
  %1931 = vmatpush1.msra.mxu0 0.0
  %1932 = vmatprep.subr.mxu0 0.0
  %1933 = vmatpush1.msra.mxu0 0.0
  %1934 = vmatprep.subr.mxu0 0.0
  %1935 = vmatpush1.msra.mxu0 0.0
  %1936 = vmatprep.subr.mxu0 0.0
  %1937 = vmatpush1.msra.mxu0 0.0
  %1938 = vmatprep.subr.mxu0 0.0
  %1939 = vmatpush1.msra.mxu0 0.0
  %1940 = vmatprep.subr.mxu0 0.0
  %1941 = vmatpush1.msra.mxu0 0.0
  %1942 = vmatprep.subr.mxu0 0.0
  %1943 = vmatpush1.msra.mxu0 0.0
  %1944 = vmatprep.subr.mxu0 0.0
  %1945 = vmatpush1.msra.mxu0 0.0
  %1946 = vmatprep.subr.mxu0 0.0
  %1947 = vmatpush1.msra.mxu0 0.0
  %1948 = vmatprep.subr.mxu0 0.0
  %1949 = vmatpush1.msra.mxu0 0.0
  %1950 = vmatprep.subr.mxu0 0.0
  %1951 = vmatpush1.msra.mxu0 0.0
  %1952 = vmatprep.subr.mxu0 0.0
  %1953 = vmatpush1.msra.mxu0 0.0
  %1954 = vmatprep.subr.mxu0 0.0
  %1955 = vmatpush1.msra.mxu0 0.0
  %1956 = vmatprep.subr.mxu0 0.0
  %1957 = vmatpush1.msra.mxu0 0.0
  %1958 = vmatprep.subr.mxu0 0.0
  %1959 = vmatpush1.msra.mxu0 0.0
  %1960 = vmatprep.subr.mxu0 0.0
  %1961 = vmatpush1.msra.mxu0 0.0
  %1962 = vmatprep.subr.mxu0 0.0
  %1963 = vmatpush1.msra.mxu0 0.0
  %1964 = vmatprep.subr.mxu0 0.0
  %1965 = vmatpush1.msra.mxu0 0.0
  %1966 = vmatprep.subr.mxu0 0.0
  %1967 = vmatpush1.msra.mxu0 0.0
  %1968 = vmatprep.subr.mxu0 0.0
  %1969 = vmatpush1.msra.mxu0 0.0
  %1970 = vmatprep.subr.mxu0 0.0
  %1971 = vmatpush1.msra.mxu0 0.0
  %1972 = vmatprep.subr.mxu0 0.0
  %1973 = vmatpush1.msra.mxu0 0.0
  %1974 = vmatprep.subr.mxu0 0.0
  %1975 = vmatpush1.msra.mxu0 0.0
  %1976 = vmatprep.subr.mxu0 0.0
  %1977 = vmatpush1.msra.mxu0 0.0
  %1978 = vmatprep.subr.mxu0 0.0
  %1979 = vmatpush1.msra.mxu0 0.0
  %1980 = vmatprep.subr.mxu0 0.0
  %1981 = vmatpush1.msra.mxu0 0.0
  %1982 = vmatprep.mubr.f32.mxu0 0.0
  %1983 = vmatmul.mubr.f32.gmra.mrb[0].mxu0 %v1916
  %v1984 = vpop.f32.mrb[0].mxu0
  %v1985 = vadd.f32 %v1911, %v1984
  %v1986 = vpop.f32.mrb[0].mxu0
  %1987 = vdwg.mxu0
  %1988 = vmax.xlane.f32.xlu0 %v1985
  %v1989 = vpop.xlane.xlu0 %1988
  %v1990 = vsub.f32 %v1985, %v1989
  %v1991 = vmul.f32 %v1990, 1.442695
  %v1992 = vpow.pop %v1991
  %1993 = vadd.xlane.f32.xlu0 %v1992
  %v1994 = vpop.xlane.xlu0 %1993
  %v1995 = vlog2.pop %v1994
  %v1996 = vmul.f32 %v1995, 0.6931472
  %v1997 = vsub.f32 %v1990, %v1996
  %1998 = vst [vmem:[%s9] sm:$0xff] %v1997
  // Predicated region
  $region38: #{mnist_lstm_forward.1} parent=0 // pred_check
    _
  $region39: #{mnist_lstm_forward.1} parent=0 // pred_check_branch
    %2000 = sbr.rel (0) target = $region41
  $region40: #{mnist_lstm_forward.1} parent=0 // pred_region
    _
  $region41: #{mnist_lstm_forward.1} parent=0 // pred_fallthru
    _
  // Predicated region
  $region42: #{mnist_lstm_forward.1} parent=0 // pred_check
    _
  $region43: #{mnist_lstm_forward.1} parent=0 // pred_check_branch
    %2002 = sbr.rel (0) target = $region45
  $region44: #{mnist_lstm_forward.1} parent=0 // pred_region
    _
  $region45: #{mnist_lstm_forward.1} parent=0 // pred_fallthru
    _

</llo_original>
